<compile_context>
chip_gen: v7x
topology: tpu7x:2x2x1
jax: 0.10.0
libtpu: 0.0.40
codegen_flags: <defaults>
</compile_context>

<pallas_src>
import jax
import jax.numpy as jnp
import numpy as np
from jax import lax
from jax.experimental import pallas as pl
from jax.experimental.pallas import tpu as pltpu


def _make_kernel(tile_h, W, C, K):
    """Pallas kernel body specialized to static tile_h, W, C, K (stride=1, odd K)."""
    p = K // 2

    def kernel(x_ref, wdw_ref, wpw_ref, bn_ref, o_ref, xpad_ref):
        # x_ref   : (1, H, W, C)          full image of this batch element (VMEM)
        # wdw_ref : (K*K, C)              depthwise taps, channel on lanes
        # wpw_ref : (C, C)                pointwise weight laid out (C_in, C_out)
        # bn_ref  : (2, C)                row 0 = BN scale, row 1 = BN shift
        # o_ref   : (1, tile_h, W, C)     output tile
        # xpad_ref: (tile_h+2p, W+2p, C)  zero-bordered scratch (input dtype)
        i = pl.program_id(1)
        n_h = pl.num_programs(1)
        r0 = i * tile_h                      # first output row of this tile

        # ---- assemble the zero-padded input slab for this tile in VMEM ----
        xpad_ref[...] = jnp.zeros_like(xpad_ref)
        xpad_ref[p:p + tile_h, p:p + W, :] = x_ref[0, pl.ds(r0, tile_h), :, :]

        @pl.when(i > 0)                      # top halo rows (zero pad at image top)
        def _():
            xpad_ref[0:p, p:p + W, :] = x_ref[0, pl.ds(r0 - p, p), :, :]

        @pl.when(i < n_h - 1)                # bottom halo rows (zero pad at bottom)
        def _():
            xpad_ref[p + tile_h:p + tile_h + p, p:p + W, :] = (
                x_ref[0, pl.ds(r0 + tile_h, p), :, :])

        # ---- depthwise KxK conv: unrolled shifted-window MACs on the VPU ----
        w_taps = wdw_ref[...].astype(jnp.float32)          # (K*K, C), loaded once
        acc = jnp.zeros((tile_h, W, C), jnp.float32)
        for t in range(K * K):
            dh, dw = t // K, t % K
            patch = xpad_ref[dh:dh + tile_h, dw:dw + W, :].astype(jnp.float32)
            acc = acc + patch * w_taps[t][None, None, :]

        # ---- pointwise 1x1 conv: (tile_h*W, C) @ (C, C) on the MXU ----
        h2 = acc.reshape(tile_h * W, C)
        pw = jnp.dot(h2, wpw_ref[...].astype(jnp.float32),
                     preferred_element_type=jnp.float32,
                     precision=lax.Precision.HIGHEST)

        # ---- GELU + inference-mode BatchNorm (folded to per-channel scale/shift) ----
        # TODO(synk): torch nn.GELU defaults to the exact erf form; the tanh
        # approximation is used here (not guaranteed erf lowering in Mosaic).
        act = jax.nn.gelu(pw, approximate=True)
        bn = bn_ref[...].astype(jnp.float32)
        y = act * bn[0][None, :] + bn[1][None, :]

        o_ref[0] = y.reshape(tile_h, W, C).astype(o_ref.dtype)

    return kernel


def dwc_patch_embed(x, dw_weight, pw_weight, bn_gamma, bn_beta,
                    bn_mean, bn_var, *, eps=1e-5, tile_h=8):
    """DWCPatchEmbed forward (stride=1, odd kernel_size, norm_cfg='BN', eval-mode BN).

    Args:
      x:         (B, H, W, C) NHWC input (torch NCHW input in channels-last layout)
      dw_weight: (C, 1, K, K) torch depthwise Conv2d weight (groups=C, bias=False)
      pw_weight: (C, C, 1, 1) torch pointwise Conv2d weight (bias=False)
      bn_*:      (C,) BatchNorm2d gamma / beta / running_mean / running_var
    Returns:
      (B, H, W, C)
    """
    B, H, W, C = x.shape
    K = dw_weight.shape[-1]
    assert dw_weight.shape == (C, 1, K, K), "depthwise path requires in_chans == embed_dim"
    assert pw_weight.shape[:2] == (C, C)
    assert K % 2 == 1, "even kernel sizes not supported in the Pallas path"
    # TODO(synk): stride > 1, even kernel_size, norm_cfg='LN', and training-mode
    # (batch-statistics) BatchNorm paths of DWConv2d_BN are not implemented here.
    p = K // 2

    th = tile_h if (tile_h >= p and H % tile_h == 0) else H
    n_h = H // th

    # Depthwise taps (K*K, C): [dh*K + dw, c] = dw_weight[c, 0, dh, dw]
    w_taps = jnp.transpose(dw_weight[:, 0, :, :], (1, 2, 0)).reshape(K * K, C)
    # Pointwise weight as a (C_in, C_out) matmul operand.
    w_pw = jnp.transpose(pw_weight[:, :, 0, 0], (1, 0))
    # Inference BatchNorm folded into per-channel scale / shift.
    scale = bn_gamma * lax.rsqrt(bn_var + eps)
    shift = bn_beta - bn_mean * scale
    bn2 = jnp.stack([scale, shift], axis=0).astype(jnp.float32)     # (2, C)

    kernel = _make_kernel(th, W, C, K)

    out = pl.pallas_call(
        kernel,
        out_shape=jax.ShapeDtypeStruct((B, H, W, C), x.dtype),
        grid_spec=pltpu.PrefetchScalarGridSpec(
            num_scalar_prefetch=0,
            grid=(B, n_h),
            in_specs=[
                # Full image per batch element; block index depends only on b, so
                # it is fetched once per batch and stays resident across H tiles.
                pl.BlockSpec((1, H, W, C), lambda b, i: (b, 0, 0, 0)),
                pl.BlockSpec((K * K, C), lambda b, i: (0, 0)),
                pl.BlockSpec((C, C), lambda b, i: (0, 0)),
                pl.BlockSpec((2, C), lambda b, i: (0, 0)),
            ],
            out_specs=pl.BlockSpec((1, th, W, C), lambda b, i: (b, i, 0, 0)),
            scratch_shapes=[pltpu.VMEM((th + 2 * p, W + 2 * p, C), x.dtype)],
        ),
        compiler_params=pltpu.CompilerParams(
            dimension_semantics=("parallel", "parallel"),
            vmem_limit_bytes=32 * 1024 * 1024,
        ),
    )(x, w_taps, w_pw, bn2)
    return out


def _reference(x, dw_weight, pw_weight, bn_gamma, bn_beta, bn_mean, bn_var, eps=1e-5):
    """Pure-JAX reference of the PyTorch forward (dwconv -> pwconv -> GELU -> BN)."""
    B, H, W, C = x.shape
    w_hwio = jnp.transpose(dw_weight, (2, 3, 1, 0)).astype(jnp.float32)   # (K, K, 1, C)
    dw = lax.conv_general_dilated(
        x.astype(jnp.float32), w_hwio, window_strides=(1, 1), padding="SAME",
        dimension_numbers=("NHWC", "HWIO", "NHWC"), feature_group_count=C,
        precision=lax.Precision.HIGHEST)
    w_pw = jnp.transpose(pw_weight[:, :, 0, 0], (1, 0)).astype(jnp.float32)
    pw = jnp.einsum("bhwc,cd->bhwd", dw, w_pw, precision=lax.Precision.HIGHEST)
    act = jax.nn.gelu(pw, approximate=True)
    scale = bn_gamma * lax.rsqrt(bn_var + eps)
    shift = bn_beta - bn_mean * scale
    y = act * scale[None, None, None, :] + shift[None, None, None, :]
    return y.astype(x.dtype)


if __name__ == "__main__":
    key = jax.random.PRNGKey(0)
    kx, kdw, kpw, kg, kb, km, kv = jax.random.split(key, 7)

    # in_chans == embed_dim == 32, patch_size (kernel) = 3, stride = 1
    B, C, H, W, K = 2, 32, 16, 16, 3

    x = jax.random.normal(kx, (B, H, W, C), dtype=jnp.float32)
    dw_weight = jax.random.normal(kdw, (C, 1, K, K), dtype=jnp.float32) * 0.2
    pw_weight = jax.random.normal(kpw, (C, C, 1, 1), dtype=jnp.float32) * (1.0 / np.sqrt(C))
    bn_gamma = 1.0 + 0.1 * jax.random.normal(kg, (C,), dtype=jnp.float32)
    bn_beta = 0.1 * jax.random.normal(kb, (C,), dtype=jnp.float32)
    bn_mean = 0.1 * jax.random.normal(km, (C,), dtype=jnp.float32)
    bn_var = jnp.abs(jax.random.normal(kv, (C,), dtype=jnp.float32)) * 0.5 + 0.5

    out = dwc_patch_embed(x, dw_weight, pw_weight, bn_gamma, bn_beta, bn_mean, bn_var)
    out = jax.block_until_ready(out)

    ref = _reference(x, dw_weight, pw_weight, bn_gamma, bn_beta, bn_mean, bn_var)
    assert out.shape == (B, H, W, C)
    np.testing.assert_allclose(np.asarray(out), np.asarray(ref), rtol=2e-2, atol=2e-3)
    print("KERNEL_OK")
</pallas_src>

<mosaic_0001>
module attributes {stable_mosaic.version = 11 : i64} {
  func.func @kernel(%arg0: i32, %arg1: i32, %arg2: memref<1x16x16x32xf32, #tpu.memory_space<vmem>>, %arg3: memref<9x32xf32, #tpu.memory_space<vmem>>, %arg4: memref<32x32xf32, #tpu.memory_space<vmem>>, %arg5: memref<2x32xf32, #tpu.memory_space<vmem>>, %arg6: memref<1x8x16x32xf32, #tpu.memory_space<vmem>>, %arg7: memref<10x18x32xf32, #tpu.memory_space<vmem>>) attributes {dimension_semantics = [#tpu.dimension_semantics<parallel>, #tpu.dimension_semantics<parallel>], iteration_bounds = array<i64: 2, 2>, scalar_prefetch = 0 : i64, scratch_operands = 1 : i64, tpu.core_type = #tpu.core_type<tc>, window_params = [{transform_indices = @transform_0, window_bounds = array<i64: 1, 16, 16, 32>}, {pipeline_mode = #tpu.pipeline_mode<synchronous>, transform_indices = @transform_1, window_bounds = array<i64: 9, 32>}, {pipeline_mode = #tpu.pipeline_mode<synchronous>, transform_indices = @transform_2, window_bounds = array<i64: 32, 32>}, {pipeline_mode = #tpu.pipeline_mode<synchronous>, transform_indices = @transform_3, window_bounds = array<i64: 2, 32>}, {transform_indices = @transform_4, window_bounds = array<i64: 1, 8, 16, 32>}]} {
    %c8_i32 = arith.constant 8 : i32
    %0 = arith.muli %arg1, %c8_i32 : i32
    %cst = arith.constant 0.000000e+00 : f32
    %1 = vector.broadcast %cst : f32 to vector<10x18x32xf32>
    %c0 = arith.constant 0 : index
    %c0_0 = arith.constant 0 : index
    %c0_1 = arith.constant 0 : index
    %2 = vector.load %arg7[%c0, %c0_0, %c0_1] : memref<10x18x32xf32, #tpu.memory_space<vmem>>, vector<10x18x32xf32>
    tpu.vector_store %arg7[%c0, %c0_0, %c0_1], %1 {strides = array<i32>} : memref<10x18x32xf32, #tpu.memory_space<vmem>>, vector<10x18x32xf32>,
    %c0_2 = arith.constant 0 : index
    %3 = arith.index_cast %0 : i32 to index
    %c0_3 = arith.constant 0 : index
    %c0_4 = arith.constant 0 : index
    %4 = vector.load %arg2[%c0_2, %3, %c0_3, %c0_4] : memref<1x16x16x32xf32, #tpu.memory_space<vmem>>, vector<1x8x16x32xf32>
    %5 = vector.shape_cast %4 : vector<1x8x16x32xf32> to vector<8x16x32xf32>
    %c1 = arith.constant 1 : index
    %c1_5 = arith.constant 1 : index
    %c0_6 = arith.constant 0 : index
    %6 = vector.load %arg7[%c1, %c1_5, %c0_6] : memref<10x18x32xf32, #tpu.memory_space<vmem>>, vector<8x16x32xf32>
    tpu.vector_store %arg7[%c1, %c1_5, %c0_6], %5 {strides = array<i32>} : memref<10x18x32xf32, #tpu.memory_space<vmem>>, vector<8x16x32xf32>,
    %c0_i32 = arith.constant 0 : i32
    %7 = arith.cmpi sgt, %arg1, %c0_i32 : i32
    %8 = arith.extui %7 : i1 to i32
    %c0_i32_7 = arith.constant 0 : i32
    %9 = arith.cmpi ne, %8, %c0_i32_7 : i32
    scf.if %9 {
      %c1_i32_51 = arith.constant 1 : i32
      %109 = arith.subi %0, %c1_i32_51 : i32
      %c0_52 = arith.constant 0 : index
      %110 = arith.index_cast %109 : i32 to index
      %c0_53 = arith.constant 0 : index
      %c0_54 = arith.constant 0 : index
      %111 = vector.load %arg2[%c0_52, %110, %c0_53, %c0_54] : memref<1x16x16x32xf32, #tpu.memory_space<vmem>>, vector<1x1x16x32xf32>
      %112 = vector.shape_cast %111 : vector<1x1x16x32xf32> to vector<1x16x32xf32>
      %c0_55 = arith.constant 0 : index
      %c1_56 = arith.constant 1 : index
      %c0_57 = arith.constant 0 : index
      %113 = vector.load %arg7[%c0_55, %c1_56, %c0_57] : memref<10x18x32xf32, #tpu.memory_space<vmem>>, vector<1x16x32xf32>
      tpu.vector_store %arg7[%c0_55, %c1_56, %c0_57], %112 {strides = array<i32>} : memref<10x18x32xf32, #tpu.memory_space<vmem>>, vector<1x16x32xf32>,
    } else {
    }
    %c1_i32 = arith.constant 1 : i32
    %10 = arith.cmpi slt, %arg1, %c1_i32 : i32
    %11 = arith.extui %10 : i1 to i32
    %c0_i32_8 = arith.constant 0 : i32
    %12 = arith.cmpi ne, %11, %c0_i32_8 : i32
    scf.if %12 {
      %c8_i32_51 = arith.constant 8 : i32
      %109 = arith.addi %0, %c8_i32_51 : i32
      %c0_52 = arith.constant 0 : index
      %110 = arith.index_cast %109 : i32 to index
      %c0_53 = arith.constant 0 : index
      %c0_54 = arith.constant 0 : index
      %111 = vector.load %arg2[%c0_52, %110, %c0_53, %c0_54] : memref<1x16x16x32xf32, #tpu.memory_space<vmem>>, vector<1x1x16x32xf32>
      %112 = vector.shape_cast %111 : vector<1x1x16x32xf32> to vector<1x16x32xf32>
      %c9 = arith.constant 9 : index
      %c1_55 = arith.constant 1 : index
      %c0_56 = arith.constant 0 : index
      %113 = vector.load %arg7[%c9, %c1_55, %c0_56] : memref<10x18x32xf32, #tpu.memory_space<vmem>>, vector<1x16x32xf32>
      tpu.vector_store %arg7[%c9, %c1_55, %c0_56], %112 {strides = array<i32>} : memref<10x18x32xf32, #tpu.memory_space<vmem>>, vector<1x16x32xf32>,
    } else {
    }
    %c0_9 = arith.constant 0 : index
    %c0_10 = arith.constant 0 : index
    %13 = vector.load %arg3[%c0_9, %c0_10] : memref<9x32xf32, #tpu.memory_space<vmem>>, vector<9x32xf32>
    %cst_11 = arith.constant 0.000000e+00 : f32
    %14 = vector.broadcast %cst_11 : f32 to vector<8x16x32xf32>
    %c0_12 = arith.constant 0 : index
    %c0_13 = arith.constant 0 : index
    %c0_14 = arith.constant 0 : index
    %15 = vector.load %arg7[%c0_12, %c0_13, %c0_14] : memref<10x18x32xf32, #tpu.memory_space<vmem>>, vector<8x16x32xf32>
    %16 = vector.extract_strided_slice %13 {offsets = [0, 0], sizes = [1, 32], strides = [1, 1]} : vector<9x32xf32> to vector<1x32xf32>
    %17 = vector.shape_cast %16 : vector<1x32xf32> to vector<32xf32>
    %18 = vector.shape_cast %17 : vector<32xf32> to vector<1x1x32xf32>
    %19 = vector.broadcast %18 : vector<1x1x32xf32> to vector<8x16x32xf32>
    %20 = arith.mulf %15, %19 : vector<8x16x32xf32>
    %21 = arith.addf %14, %20 : vector<8x16x32xf32>
    %c0_15 = arith.constant 0 : index
    %c1_16 = arith.constant 1 : index
    %c0_17 = arith.constant 0 : index
    %22 = vector.load %arg7[%c0_15, %c1_16, %c0_17] : memref<10x18x32xf32, #tpu.memory_space<vmem>>, vector<8x16x32xf32>
    %23 = vector.extract_strided_slice %13 {offsets = [1, 0], sizes = [1, 32], strides = [1, 1]} : vector<9x32xf32> to vector<1x32xf32>
    %24 = vector.shape_cast %23 : vector<1x32xf32> to vector<32xf32>
    %25 = vector.shape_cast %24 : vector<32xf32> to vector<1x1x32xf32>
    %26 = vector.broadcast %25 : vector<1x1x32xf32> to vector<8x16x32xf32>
    %27 = arith.mulf %22, %26 : vector<8x16x32xf32>
    %28 = arith.addf %21, %27 : vector<8x16x32xf32>
    %c0_18 = arith.constant 0 : index
    %c2 = arith.constant 2 : index
    %c0_19 = arith.constant 0 : index
    %29 = vector.load %arg7[%c0_18, %c2, %c0_19] : memref<10x18x32xf32, #tpu.memory_space<vmem>>, vector<8x16x32xf32>
    %30 = vector.extract_strided_slice %13 {offsets = [2, 0], sizes = [1, 32], strides = [1, 1]} : vector<9x32xf32> to vector<1x32xf32>
    %31 = vector.shape_cast %30 : vector<1x32xf32> to vector<32xf32>
    %32 = vector.shape_cast %31 : vector<32xf32> to vector<1x1x32xf32>
    %33 = vector.broadcast %32 : vector<1x1x32xf32> to vector<8x16x32xf32>
    %34 = arith.mulf %29, %33 : vector<8x16x32xf32>
    %35 = arith.addf %28, %34 : vector<8x16x32xf32>
    %c1_20 = arith.constant 1 : index
    %c0_21 = arith.constant 0 : index
    %c0_22 = arith.constant 0 : index
    %36 = vector.load %arg7[%c1_20, %c0_21, %c0_22] : memref<10x18x32xf32, #tpu.memory_space<vmem>>, vector<8x16x32xf32>
    %37 = vector.extract_strided_slice %13 {offsets = [3, 0], sizes = [1, 32], strides = [1, 1]} : vector<9x32xf32> to vector<1x32xf32>
    %38 = vector.shape_cast %37 : vector<1x32xf32> to vector<32xf32>
    %39 = vector.shape_cast %38 : vector<32xf32> to vector<1x1x32xf32>
    %40 = vector.broadcast %39 : vector<1x1x32xf32> to vector<8x16x32xf32>
    %41 = arith.mulf %36, %40 : vector<8x16x32xf32>
    %42 = arith.addf %35, %41 : vector<8x16x32xf32>
    %c1_23 = arith.constant 1 : index
    %c1_24 = arith.constant 1 : index
    %c0_25 = arith.constant 0 : index
    %43 = vector.load %arg7[%c1_23, %c1_24, %c0_25] : memref<10x18x32xf32, #tpu.memory_space<vmem>>, vector<8x16x32xf32>
    %44 = vector.extract_strided_slice %13 {offsets = [4, 0], sizes = [1, 32], strides = [1, 1]} : vector<9x32xf32> to vector<1x32xf32>
    %45 = vector.shape_cast %44 : vector<1x32xf32> to vector<32xf32>
    %46 = vector.shape_cast %45 : vector<32xf32> to vector<1x1x32xf32>
    %47 = vector.broadcast %46 : vector<1x1x32xf32> to vector<8x16x32xf32>
    %48 = arith.mulf %43, %47 : vector<8x16x32xf32>
    %49 = arith.addf %42, %48 : vector<8x16x32xf32>
    %c1_26 = arith.constant 1 : index
    %c2_27 = arith.constant 2 : index
    %c0_28 = arith.constant 0 : index
    %50 = vector.load %arg7[%c1_26, %c2_27, %c0_28] : memref<10x18x32xf32, #tpu.memory_space<vmem>>, vector<8x16x32xf32>
    %51 = vector.extract_strided_slice %13 {offsets = [5, 0], sizes = [1, 32], strides = [1, 1]} : vector<9x32xf32> to vector<1x32xf32>
    %52 = vector.shape_cast %51 : vector<1x32xf32> to vector<32xf32>
    %53 = vector.shape_cast %52 : vector<32xf32> to vector<1x1x32xf32>
    %54 = vector.broadcast %53 : vector<1x1x32xf32> to vector<8x16x32xf32>
    %55 = arith.mulf %50, %54 : vector<8x16x32xf32>
    %56 = arith.addf %49, %55 : vector<8x16x32xf32>
    %c2_29 = arith.constant 2 : index
    %c0_30 = arith.constant 0 : index
    %c0_31 = arith.constant 0 : index
    %57 = vector.load %arg7[%c2_29, %c0_30, %c0_31] : memref<10x18x32xf32, #tpu.memory_space<vmem>>, vector<8x16x32xf32>
    %58 = vector.extract_strided_slice %13 {offsets = [6, 0], sizes = [1, 32], strides = [1, 1]} : vector<9x32xf32> to vector<1x32xf32>
    %59 = vector.shape_cast %58 : vector<1x32xf32> to vector<32xf32>
    %60 = vector.shape_cast %59 : vector<32xf32> to vector<1x1x32xf32>
    %61 = vector.broadcast %60 : vector<1x1x32xf32> to vector<8x16x32xf32>
    %62 = arith.mulf %57, %61 : vector<8x16x32xf32>
    %63 = arith.addf %56, %62 : vector<8x16x32xf32>
    %c2_32 = arith.constant 2 : index
    %c1_33 = arith.constant 1 : index
    %c0_34 = arith.constant 0 : index
    %64 = vector.load %arg7[%c2_32, %c1_33, %c0_34] : memref<10x18x32xf32, #tpu.memory_space<vmem>>, vector<8x16x32xf32>
    %65 = vector.extract_strided_slice %13 {offsets = [7, 0], sizes = [1, 32], strides = [1, 1]} : vector<9x32xf32> to vector<1x32xf32>
    %66 = vector.shape_cast %65 : vector<1x32xf32> to vector<32xf32>
    %67 = vector.shape_cast %66 : vector<32xf32> to vector<1x1x32xf32>
    %68 = vector.broadcast %67 : vector<1x1x32xf32> to vector<8x16x32xf32>
    %69 = arith.mulf %64, %68 : vector<8x16x32xf32>
    %70 = arith.addf %63, %69 : vector<8x16x32xf32>
    %c2_35 = arith.constant 2 : index
    %c2_36 = arith.constant 2 : index
    %c0_37 = arith.constant 0 : index
    %71 = vector.load %arg7[%c2_35, %c2_36, %c0_37] : memref<10x18x32xf32, #tpu.memory_space<vmem>>, vector<8x16x32xf32>
    %72 = vector.extract_strided_slice %13 {offsets = [8, 0], sizes = [1, 32], strides = [1, 1]} : vector<9x32xf32> to vector<1x32xf32>
    %73 = vector.shape_cast %72 : vector<1x32xf32> to vector<32xf32>
    %74 = vector.shape_cast %73 : vector<32xf32> to vector<1x1x32xf32>
    %75 = vector.broadcast %74 : vector<1x1x32xf32> to vector<8x16x32xf32>
    %76 = arith.mulf %71, %75 : vector<8x16x32xf32>
    %77 = arith.addf %70, %76 : vector<8x16x32xf32>
    %78 = vector.shape_cast %77 : vector<8x16x32xf32> to vector<128x32xf32>
    %c0_38 = arith.constant 0 : index
    %c0_39 = arith.constant 0 : index
    %79 = vector.load %arg4[%c0_38, %c0_39] : memref<32x32xf32, #tpu.memory_space<vmem>>, vector<32x32xf32>
    %cst_40 = arith.constant dense<0.000000e+00> : vector<128x32xf32>
    %80 = tpu.matmul %78, %79, %cst_40 {dimension_numbers = #tpu.dot_dimension_numbers<[1], [0], [0], [1], [0, 0, 1, 1], [], []>, precision = #tpu.contract_precision<fp32>} : vector<128x32xf32>, vector<32x32xf32>, vector<128x32xf32> -> vector<128x32xf32>
    %81 = arith.mulf %80, %80 : vector<128x32xf32>
    %82 = arith.mulf %80, %81 : vector<128x32xf32>
    %cst_41 = arith.constant 4.471500e-02 : f32
    %83 = vector.broadcast %cst_41 : f32 to vector<128x32xf32>
    %84 = arith.mulf %83, %82 : vector<128x32xf32>
    %85 = arith.addf %80, %84 : vector<128x32xf32>
    %cst_42 = arith.constant 0.797884583 : f32
    %86 = vector.broadcast %cst_42 : f32 to vector<128x32xf32>
    %87 = arith.mulf %86, %85 : vector<128x32xf32>
    %88 = math.tanh %87 : vector<128x32xf32>
    %cst_43 = arith.constant 1.000000e+00 : f32
    %89 = vector.broadcast %cst_43 : f32 to vector<128x32xf32>
    %90 = arith.addf %89, %88 : vector<128x32xf32>
    %cst_44 = arith.constant 5.000000e-01 : f32
    %91 = vector.broadcast %cst_44 : f32 to vector<128x32xf32>
    %92 = arith.mulf %91, %90 : vector<128x32xf32>
    %93 = arith.mulf %80, %92 : vector<128x32xf32>
    %c0_45 = arith.constant 0 : index
    %c0_46 = arith.constant 0 : index
    %94 = vector.load %arg5[%c0_45, %c0_46] : memref<2x32xf32, #tpu.memory_space<vmem>>, vector<2x32xf32>
    %95 = vector.extract_strided_slice %94 {offsets = [0, 0], sizes = [1, 32], strides = [1, 1]} : vector<2x32xf32> to vector<1x32xf32>
    %96 = vector.shape_cast %95 : vector<1x32xf32> to vector<32xf32>
    %97 = vector.shape_cast %96 : vector<32xf32> to vector<1x32xf32>
    %98 = vector.broadcast %97 : vector<1x32xf32> to vector<128x32xf32>
    %99 = arith.mulf %93, %98 : vector<128x32xf32>
    %100 = vector.extract_strided_slice %94 {offsets = [1, 0], sizes = [1, 32], strides = [1, 1]} : vector<2x32xf32> to vector<1x32xf32>
    %101 = vector.shape_cast %100 : vector<1x32xf32> to vector<32xf32>
    %102 = vector.shape_cast %101 : vector<32xf32> to vector<1x32xf32>
    %103 = vector.broadcast %102 : vector<1x32xf32> to vector<128x32xf32>
    %104 = arith.addf %99, %103 : vector<128x32xf32>
    %105 = vector.shape_cast %104 : vector<128x32xf32> to vector<8x16x32xf32>
    %c0_47 = arith.constant 0 : index
    %c0_48 = arith.constant 0 : index
    %c0_49 = arith.constant 0 : index
    %c0_50 = arith.constant 0 : index
    %106 = vector.load %arg6[%c0_47, %c0_48, %c0_49, %c0_50] : memref<1x8x16x32xf32, #tpu.memory_space<vmem>>, vector<1x8x16x32xf32>
    %107 = vector.shape_cast %106 : vector<1x8x16x32xf32> to vector<8x16x32xf32>
    %108 = vector.shape_cast %105 : vector<8x16x32xf32> to vector<1x8x16x32xf32>
    tpu.vector_store %arg6[%c0_47, %c0_48, %c0_49, %c0_50], %108 {strides = array<i32>} : memref<1x8x16x32xf32, #tpu.memory_space<vmem>>, vector<1x8x16x32xf32>,
    return
  }
  func.func @transform_0(%arg0: i32, %arg1: i32) -> (i32, i32, i32, i32) {
    %c0_i32 = arith.constant 0 : i32
    %c0_i32_0 = arith.constant 0 : i32
    %c0_i32_1 = arith.constant 0 : i32
    %c0_i32_2 = arith.constant 0 : i32
    return %arg0, %c0_i32, %c0_i32_0, %c0_i32_1 : i32, i32, i32, i32
  }
  func.func @transform_1(%arg0: i32, %arg1: i32) -> (i32, i32) {
    %c0_i32 = arith.constant 0 : i32
    %c0_i32_0 = arith.constant 0 : i32
    %c0_i32_1 = arith.constant 0 : i32
    return %c0_i32, %c0_i32_0 : i32, i32
  }
  func.func @transform_2(%arg0: i32, %arg1: i32) -> (i32, i32) {
    %c0_i32 = arith.constant 0 : i32
    %c0_i32_0 = arith.constant 0 : i32
    %c0_i32_1 = arith.constant 0 : i32
    return %c0_i32, %c0_i32_0 : i32, i32
  }
  func.func @transform_3(%arg0: i32, %arg1: i32) -> (i32, i32) {
    %c0_i32 = arith.constant 0 : i32
    %c0_i32_0 = arith.constant 0 : i32
    %c0_i32_1 = arith.constant 0 : i32
    return %c0_i32, %c0_i32_0 : i32, i32
  }
  func.func @transform_4(%arg0: i32, %arg1: i32) -> (i32, i32, i32, i32) {
    %c0_i32 = arith.constant 0 : i32
    %c0_i32_0 = arith.constant 0 : i32
    %c0_i32_1 = arith.constant 0 : i32
    return %arg0, %arg1, %c0_i32, %c0_i32_0 : i32, i32, i32, i32
  }
}

</mosaic_0001>

<llo_original>
// kernel: tpu_custom_call.1
$region0: #{tpu_custom_call.1}
  #allocation0 [shape = 'u32[]', space=smem, size = 0x4, offset = 0x4, fixed_abs, tag = 'smem constant byte address 0x4 - core index']
  #allocation1 [shape = 'u32[144,128]{1,0:T(1,128)}', space=vmem, size = 0x12000, scoped, tag = 'internal scratch']
  #allocation2 [shape = 'f32[10,18,32]{2,1,0:T(8,128)}', space=vmem, size = 0x1e000, scoped, tag = 'scratch operand']
  %s0 = inlined_call_operand.hbm [shape: f32[2,16,16,32], index: 0, kind: input, shape index: {}]
  %s1 = inlined_call_operand.hbm [shape: f32[9,32], index: 1, kind: input, shape index: {}]
  %s2 = inlined_call_operand.hbm [shape: f32[32,32], index: 2, kind: input, shape index: {}]
  %s3 = inlined_call_operand.vmem [shape: f32[2,32], index: 3, kind: input, shape index: {}]
  %s4 = inlined_call_operand.hbm [shape: f32[2,16,16,32], index: 4, kind: output, shape index: {}]
  %s5 = sld [smem:[#allocation0]]
  $region69: #{tpu_custom_call.1} parent=0
    _
  %s7 = ssub.s32 1, %s5
  %s8 = scalar_select 0, %s7, %s5
  $region1: #{tpu_custom_call.1} parent=0
    #allocation3 [shape = 'u8[262144]{0}', space=vmem, size = 0x40000, scoped, tag = 'input window, operand 0']
    #allocation4 [shape = 's32[2]{0}', space=sflag, size = 0x8, scoped, tag = 'scoped memory for tpu_custom_call.1']
    #allocation5 [shape = 's32[2]{0}', space=sflag, size = 0x8, scoped, tag = 'scoped memory for tpu_custom_call.1']
    #allocation6 [shape = 'u8[8192]{0}', space=vmem, size = 0x2000, scoped, tag = 'input window, operand 1, single buffered']
    #allocation7 [shape = 's32[1]{0}', space=sflag, size = 0x4, scoped, tag = 'scoped memory for tpu_custom_call.1']
    #allocation8 [shape = 'u8[16384]{0}', space=vmem, size = 0x4000, scoped, tag = 'input window, operand 2, single buffered']
    #allocation9 [shape = 'u8[131072]{0}', space=vmem, size = 0x20000, scoped, tag = 'output window, operand 0']
    %9 = vsyncpa [#allocation4], 0
    %s10 = scalar_lea.sflag [#allocation4], 1
    %11 = vsyncpa %s10, 0
    %12 = vsyncpa [#allocation7], 0
    %13 = vsyncpa [#allocation5], 0
    %s14 = scalar_lea.sflag [#allocation5], 1
    %15 = vsyncpa %s14, 0
    loop: start=0, step=1, limit=6
    $region2: #{tpu_custom_call.1} parent=1 // loop_pre_header
      _
    $region3: #{tpu_custom_call.1} parent=1 // loop_header
      %s17 = sphi 0, %s21
      %p18 = scmp.ge.s32.totalorder %s17, 6
      %s24 = sphi 0, %s36
      %s25 = sphi 0, %s32
      %s26 = sphi 0, %s24
      %s27 = sphi 0, %s25
      %s28 = sphi 0, %s26
      %s29 = sphi 0, %s27
      %s39 = sphi 0, %s41
      %s42 = sphi 0, %s39
      %s43 = sphi 0, %s42
      %s59 = sphi 0, %s43
      %s63 = sphi 0, %s63
      %s65 = sphi 0, %s63
      %s66 = sphi 0, %s65
      %s80 = sphi 0, %s66
      %s84 = sphi 0, %s84
      %s86 = sphi 0, %s84
      %s87 = sphi 0, %s86
      %s101 = sphi 0, %s87
      %s105 = sphi 0, %s105
      %s107 = sphi 0, %s105
      %s108 = sphi 0, %s107
      %s122 = sphi 0, %s108
      %s130 = sphi 0, %s132
      %s133 = sphi 0, %s130
      %s134 = sphi 0, %s133
      %s150 = sphi 0, %s134
    $region4: #{tpu_custom_call.1} parent=1 // loop_header_branch
      %20 = sbr.rel (%p18) target = $region8
    $region5: #{tpu_custom_call.1} parent=1 // loop_body
      %s22 = ssub.s32 %s17, 1
      %s23 = ssub.s32 %s17, 2
      %s30 = sadd.s32 1, %s25
      %p31 = scmp.ge.s32.totalorder %s30, 2
      %s32 = scalar_select %p31, 0, %s30
      %s33 = sadd.s32 1, %s24
      %s34 = scalar_select %p31, %s33, %s24
      %p35 = scmp.ge.s32.totalorder %s34, 2
      %s36 = scalar_select %p35, 0, %s34
      %s37 = ssub.s32 %s24, %s36
      %p38 = scmp.eq.s32.totalorder %s37, 0
      %s40 = sadd.s32 %s39, 1
      %s41 = scalar_select %p38, %s39, %s40
      %p44 = pneg %p38
      %p45 = scmp.eq.s32.totalorder %s17, 3
      %p46 = por %p44, %p45
      %p47 = scmp.ne.s32.totalorder %s39, %s42
      %p48 = scmp.eq.s32.totalorder %s17, 0
      %p49 = por %p47, %p48
      %p50 = scmp.ne.s32.totalorder %s39, %s42
      %p51 = scmp.eq.s32.totalorder %s22, 3
      %p52 = por %p50, %p51
      %p53 = scmp.ne.s32.totalorder %s42, %s43
      %p54 = scmp.eq.s32.totalorder %s22, 0
      %p55 = por %p53, %p54
      %p56 = scmp.ne.s32.totalorder %s42, %s43
      %p57 = scmp.eq.s32.totalorder %s23, 3
      %p58 = por %p56, %p57
      %p60 = scmp.ne.s32.totalorder %s43, %s59
      %p61 = scmp.eq.s32.totalorder %s23, 0
      %p62 = por %p60, %p61
      %s64 = sadd.s32 %s63, 1
      %p67 = scmp.eq.s32.totalorder %s17, 3
      %p68 = scmp.ne.s32.totalorder %s63, %s65
      %p69 = scmp.eq.s32.totalorder %s17, 0
      %p70 = por %p68, %p69
      %p71 = scmp.ne.s32.totalorder %s63, %s65
      %p72 = scmp.eq.s32.totalorder %s22, 3
      %p73 = por %p71, %p72
      %p74 = scmp.ne.s32.totalorder %s65, %s66
      %p75 = scmp.eq.s32.totalorder %s22, 0
      %p76 = por %p74, %p75
      %p77 = scmp.ne.s32.totalorder %s65, %s66
      %p78 = scmp.eq.s32.totalorder %s23, 3
      %p79 = por %p77, %p78
      %p81 = scmp.ne.s32.totalorder %s66, %s80
      %p82 = scmp.eq.s32.totalorder %s23, 0
      %p83 = por %p81, %p82
      %s85 = sadd.s32 %s84, 1
      %p88 = scmp.eq.s32.totalorder %s17, 3
      %p89 = scmp.ne.s32.totalorder %s84, %s86
      %p90 = scmp.eq.s32.totalorder %s17, 0
      %p91 = por %p89, %p90
      %p92 = scmp.ne.s32.totalorder %s84, %s86
      %p93 = scmp.eq.s32.totalorder %s22, 3
      %p94 = por %p92, %p93
      %p95 = scmp.ne.s32.totalorder %s86, %s87
      %p96 = scmp.eq.s32.totalorder %s22, 0
      %p97 = por %p95, %p96
      %p98 = scmp.ne.s32.totalorder %s86, %s87
      %p99 = scmp.eq.s32.totalorder %s23, 3
      %p100 = por %p98, %p99
      %p102 = scmp.ne.s32.totalorder %s87, %s101
      %p103 = scmp.eq.s32.totalorder %s23, 0
      %p104 = por %p102, %p103
      %s106 = sadd.s32 %s105, 1
      %p109 = scmp.eq.s32.totalorder %s17, 3
      %p110 = scmp.ne.s32.totalorder %s105, %s107
      %p111 = scmp.eq.s32.totalorder %s17, 0
      %p112 = por %p110, %p111
      %p113 = scmp.ne.s32.totalorder %s105, %s107
      %p114 = scmp.eq.s32.totalorder %s22, 3
      %p115 = por %p113, %p114
      %p116 = scmp.ne.s32.totalorder %s107, %s108
      %p117 = scmp.eq.s32.totalorder %s22, 0
      %p118 = por %p116, %p117
      %p119 = scmp.ne.s32.totalorder %s107, %s108
      %p120 = scmp.eq.s32.totalorder %s23, 3
      %p121 = por %p119, %p120
      %p123 = scmp.ne.s32.totalorder %s108, %s122
      %p124 = scmp.eq.s32.totalorder %s23, 0
      %p125 = por %p123, %p124
      %s126 = ssub.s32 %s24, %s36
      %s127 = ssub.s32 %s25, %s32
      %s128 = sor.u32 %s126, %s127
      %p129 = scmp.eq.s32.totalorder %s128, 0
      %s131 = sadd.s32 %s130, 1
      %s132 = scalar_select %p129, %s130, %s131
      %p135 = pneg %p129
      %p136 = scmp.eq.s32.totalorder %s17, 3
      %p137 = por %p135, %p136
      %p138 = scmp.ne.s32.totalorder %s130, %s133
      %p139 = scmp.eq.s32.totalorder %s17, 0
      %p140 = por %p138, %p139
      %p141 = scmp.ne.s32.totalorder %s130, %s133
      %p142 = scmp.eq.s32.totalorder %s22, 3
      %p143 = por %p141, %p142
      %p144 = scmp.ne.s32.totalorder %s133, %s134
      %p145 = scmp.eq.s32.totalorder %s22, 0
      %p146 = por %p144, %p145
      %p147 = scmp.ne.s32.totalorder %s133, %s134
      %p148 = scmp.eq.s32.totalorder %s23, 3
      %p149 = por %p147, %p148
      %p151 = scmp.ne.s32.totalorder %s134, %s150
      %p152 = scmp.eq.s32.totalorder %s23, 0
      %p153 = por %p151, %p152
      %p154 = scmp.le.s32.totalorder 1, %s17
      %p155 = scmp.lt.s32.totalorder %s17, 5
      %p156 = pnand %p154, %p155
      %p157 = pneg %p156
      // Predicated region
      $region9: #{tpu_custom_call.1} parent=5 // pred_check
        _
      $region10: #{tpu_custom_call.1} parent=5 // pred_check_branch
        %159 = sbr.rel (%p156) target = $region12
      $region11: #{tpu_custom_call.1} parent=5 // pred_region
        %s160 = ssub.s32 %s17, 1
        // Predicated region
        $region13: #{tpu_custom_call.1} parent=11 // pred_check
          %p161 = pneg %p76
        $region14: #{tpu_custom_call.1} parent=11 // pred_check_branch
          %163 = sbr.rel (%p161) target = $region16
        $region15: #{tpu_custom_call.1} parent=11 // pred_region
          %s165 = ssub.s32 256, 256
          %166 = vsyncadd [#allocation7], %s165
          %s167 = sshll.u32 [#allocation6], 4
          %s168 = int_to_ptr.vmem [resolvable:$true] %s167
          %173 = dma.hbm_to_vmem [thread:$0]  %s1, 256, %s168, [#allocation7], 128, 128, 8
        $region16: #{tpu_custom_call.1} parent=11 // pred_fallthru
          _
        // Predicated region
        $region17: #{tpu_custom_call.1} parent=11 // pred_check
          %p174 = pneg %p97
        $region18: #{tpu_custom_call.1} parent=11 // pred_check_branch
          %176 = sbr.rel (%p174) target = $region20
        $region19: #{tpu_custom_call.1} parent=11 // pred_region
          %s178 = ssub.s32 512, 512
          %179 = vsyncadd [#allocation7], %s178
          %s180 = sshll.u32 [#allocation8], 4
          %s181 = int_to_ptr.vmem [resolvable:$true] %s180
          %186 = dma.hbm_to_vmem [thread:$0]  %s2, 512, %s181, [#allocation7], 128, 128, 8
        $region20: #{tpu_custom_call.1} parent=11 // pred_fallthru
          _
        // Predicated region
        $region21: #{tpu_custom_call.1} parent=11 // pred_check
          %p187 = pneg %p118
        $region22: #{tpu_custom_call.1} parent=11 // pred_check_branch
          %189 = sbr.rel (%p187) target = $region24
        $region23: #{tpu_custom_call.1} parent=11 // pred_region
          _
        $region24: #{tpu_custom_call.1} parent=11 // pred_fallthru
          _
      $region12: #{tpu_custom_call.1} parent=5 // pred_fallthru
        _
      %p190 = scmp.lt.s32.totalorder %s17, 4
      // Predicated region
      $region25: #{tpu_custom_call.1} parent=5 // pred_check
        %p191 = pneg %p190
      $region26: #{tpu_custom_call.1} parent=5 // pred_check_branch
        %193 = sbr.rel (%p191) target = $region28
      $region27: #{tpu_custom_call.1} parent=5 // pred_region
        // Predicated region
        $region29: #{tpu_custom_call.1} parent=27 // pred_check
          %p194 = pneg %p49
        $region30: #{tpu_custom_call.1} parent=27 // pred_check_branch
          %196 = sbr.rel (%p194) target = $region32
        $region31: #{tpu_custom_call.1} parent=27 // pred_region
          %s197 = sand.u32 %s39, 1
          %s198 = scalar_lea.sflag [#allocation4], %s197
          %s199 = sand.u32 %s39, 1
          %s200 = smul.addr %s199, 256
          %s201 = scalar_lea.vmem [#allocation3], %s200
          %s203 = ssub.s32 4096, 4096
          %204 = vsyncadd %s198, %s203
          %s205 = smul.addr %s24, 32
          %s206 = smul.addr %s205, 128
          %s207 = scalar_lea.hbm %s0, %s206
          %s208 = sshll.u32 %s201, 4
          %s209 = int_to_ptr.vmem [resolvable:$true] %s208
          %214 = dma.hbm_to_vmem [thread:$0]  %s207, 4096, %s209, %s198, 128, 128, 8
        $region32: #{tpu_custom_call.1} parent=27 // pred_fallthru
          _
      $region28: #{tpu_custom_call.1} parent=5 // pred_fallthru
        _
      %p215 = scmp.le.s32.totalorder 1, %s17
      %p216 = scmp.lt.s32.totalorder %s17, 5
      %p217 = pnand %p215, %p216
      %p218 = pneg %p217
      // Predicated region
      $region33: #{tpu_custom_call.1} parent=5 // pred_check
        _
      $region34: #{tpu_custom_call.1} parent=5 // pred_check_branch
        %220 = sbr.rel (%p217) target = $region36
      $region35: #{tpu_custom_call.1} parent=5 // pred_region
        %s221 = ssub.s32 %s17, 1
        %s222 = sand.u32 %s42, 1
        %s223 = scalar_lea.sflag [#allocation4], %s222
        %s224 = sand.u32 %s42, 1
        %s225 = smul.addr %s224, 256
        %s226 = scalar_lea.vmem [#allocation3], %s225
        // Predicated region
        $region37: #{tpu_custom_call.1} parent=35 // pred_check
          %p227 = pneg %p55
        $region38: #{tpu_custom_call.1} parent=35 // pred_check_branch
          %229 = sbr.rel (%p227) target = $region40
        $region39: #{tpu_custom_call.1} parent=35 // pred_region
          %230 = dma.done %s223, 4096
        $region40: #{tpu_custom_call.1} parent=35 // pred_fallthru
          _
        // Predicated region
        $region41: #{tpu_custom_call.1} parent=35 // pred_check
          %p231 = pneg %p76
        $region42: #{tpu_custom_call.1} parent=35 // pred_check_branch
          %233 = sbr.rel (%p231) target = $region44
        $region43: #{tpu_custom_call.1} parent=35 // pred_region
          %234 = dma.done [#allocation7], 256
        $region44: #{tpu_custom_call.1} parent=35 // pred_fallthru
          _
        // Predicated region
        $region45: #{tpu_custom_call.1} parent=35 // pred_check
          %p235 = pneg %p97
        $region46: #{tpu_custom_call.1} parent=35 // pred_check_branch
          %237 = sbr.rel (%p235) target = $region48
        $region47: #{tpu_custom_call.1} parent=35 // pred_region
          %238 = dma.done [#allocation7], 512
        $region48: #{tpu_custom_call.1} parent=35 // pred_fallthru
          _
        %s239 = sand.u32 %s42, 1
        %s240 = scalar_lea.sflag [#allocation4], %s239
        %s241 = sand.u32 %s42, 1
        %s242 = smul.addr %s241, 256
        %s243 = scalar_lea.vmem [#allocation3], %s242
        %p244 = pneg %p55
        %p245 = pneg %p52
        %p246 = pneg %p76
        %p247 = pneg %p73
        %p248 = pneg %p97
        %p249 = pneg %p94
        %p250 = pneg %p118
        %p251 = pneg %p115
        %p252 = pneg %p146
        %p253 = pneg %p143
        %s254 = sand.u32 %s133, 1
        %s255 = scalar_lea.sflag [#allocation5], %s254
        %s256 = sand.u32 %s133, 1
        %s257 = smul.addr %s256, 128
        %s258 = scalar_lea.vmem [#allocation9], %s257
        %s259 = smul.u32 8, %s27
        %s260 = smul.u32 %s27, 8
        %vm261 = vcmask 261120
        %262 = vst.msk [vmem:[#allocation2] sm:$0xff] %vm261, 0.0
        %263 = vst.msk [vmem:[#allocation2 + $0x8] sm:$0xff] %vm261, 0.0
        %vm264 = vcmask 254976
        %265 = vst.msk [vmem:[#allocation2 + $0x10] sm:$0x3] %vm264, 0.0
        %266 = vst.msk [vmem:[#allocation2 + $0x18] sm:$0xff] %vm261, 0.0
        %267 = vst.msk [vmem:[#allocation2 + $0x20] sm:$0xff] %vm261, 0.0
        %268 = vst.msk [vmem:[#allocation2 + $0x28] sm:$0x3] %vm264, 0.0
        %269 = vst.msk [vmem:[#allocation2 + $0x30] sm:$0xff] %vm261, 0.0
        %270 = vst.msk [vmem:[#allocation2 + $0x38] sm:$0xff] %vm261, 0.0
        %271 = vst.msk [vmem:[#allocation2 + $0x40] sm:$0x3] %vm264, 0.0
        %272 = vst.msk [vmem:[#allocation2 + $0x48] sm:$0xff] %vm261, 0.0
        %273 = vst.msk [vmem:[#allocation2 + $0x50] sm:$0xff] %vm261, 0.0
        %274 = vst.msk [vmem:[#allocation2 + $0x58] sm:$0x3] %vm264, 0.0
        %275 = vst.msk [vmem:[#allocation2 + $0x60] sm:$0xff] %vm261, 0.0
        %276 = vst.msk [vmem:[#allocation2 + $0x68] sm:$0xff] %vm261, 0.0
        %277 = vst.msk [vmem:[#allocation2 + $0x70] sm:$0x3] %vm264, 0.0
        %278 = vst.msk [vmem:[#allocation2 + $0x78] sm:$0xff] %vm261, 0.0
        %279 = vst.msk [vmem:[#allocation2 + $0x80] sm:$0xff] %vm261, 0.0
        %280 = vst.msk [vmem:[#allocation2 + $0x88] sm:$0x3] %vm264, 0.0
        %281 = vst.msk [vmem:[#allocation2 + $0x90] sm:$0xff] %vm261, 0.0
        %282 = vst.msk [vmem:[#allocation2 + $0x98] sm:$0xff] %vm261, 0.0
        %283 = vst.msk [vmem:[#allocation2 + $0xa0] sm:$0x3] %vm264, 0.0
        %284 = vst.msk [vmem:[#allocation2 + $0xa8] sm:$0xff] %vm261, 0.0
        %285 = vst.msk [vmem:[#allocation2 + $0xb0] sm:$0xff] %vm261, 0.0
        %286 = vst.msk [vmem:[#allocation2 + $0xb8] sm:$0x3] %vm264, 0.0
        %287 = vst.msk [vmem:[#allocation2 + $0xc0] sm:$0xff] %vm261, 0.0
        %288 = vst.msk [vmem:[#allocation2 + $0xc8] sm:$0xff] %vm261, 0.0
        %289 = vst.msk [vmem:[#allocation2 + $0xd0] sm:$0x3] %vm264, 0.0
        %290 = vst.msk [vmem:[#allocation2 + $0xd8] sm:$0xff] %vm261, 0.0
        %291 = vst.msk [vmem:[#allocation2 + $0xe0] sm:$0xff] %vm261, 0.0
        %292 = vst.msk [vmem:[#allocation2 + $0xe8] sm:$0x3] %vm264, 0.0
        %s293 = smul.u32 %s260, 16
        %s294 = scalar_lea.vmem %s226, %s293 [#allocation3]
        %v295 = vld [vmem:[%s294] sm:$0xff]
        %v296 = vld [vmem:[%s294 + $0x8] sm:$0xff]
        %v297 = vld [vmem:[%s294 + $0x10] sm:$0xff]
        %v298 = vld [vmem:[%s294 + $0x18] sm:$0xff]
        %v299 = vld [vmem:[%s294 + $0x20] sm:$0xff]
        %v300 = vld [vmem:[%s294 + $0x28] sm:$0xff]
        %v301 = vld [vmem:[%s294 + $0x30] sm:$0xff]
        %v302 = vld [vmem:[%s294 + $0x38] sm:$0xff]
        %v303 = vld [vmem:[%s294 + $0x40] sm:$0xff]
        %v304 = vld [vmem:[%s294 + $0x48] sm:$0xff]
        %v305 = vld [vmem:[%s294 + $0x50] sm:$0xff]
        %v306 = vld [vmem:[%s294 + $0x58] sm:$0xff]
        %v307 = vld [vmem:[%s294 + $0x60] sm:$0xff]
        %v308 = vld [vmem:[%s294 + $0x68] sm:$0xff]
        %v309 = vld [vmem:[%s294 + $0x70] sm:$0xff]
        %v310 = vld [vmem:[%s294 + $0x78] sm:$0xff]
        %s311 = scalar_lea.vmem [#allocation2], 24
        %312 = vst.msk [vmem:[%s311 + $0x1] sm:$0xff] %vm261, %v295
        %313 = vst.msk [vmem:[%s311 + $0x9] sm:$0xff] %vm261, %v296
        %314 = vst.msk [vmem:[%s311 + $0x19] sm:$0xff] %vm261, %v297
        %315 = vst.msk [vmem:[%s311 + $0x21] sm:$0xff] %vm261, %v298
        %316 = vst.msk [vmem:[%s311 + $0x31] sm:$0xff] %vm261, %v299
        %317 = vst.msk [vmem:[%s311 + $0x39] sm:$0xff] %vm261, %v300
        %318 = vst.msk [vmem:[%s311 + $0x49] sm:$0xff] %vm261, %v301
        %319 = vst.msk [vmem:[%s311 + $0x51] sm:$0xff] %vm261, %v302
        %320 = vst.msk [vmem:[%s311 + $0x61] sm:$0xff] %vm261, %v303
        %321 = vst.msk [vmem:[%s311 + $0x69] sm:$0xff] %vm261, %v304
        %322 = vst.msk [vmem:[%s311 + $0x79] sm:$0xff] %vm261, %v305
        %323 = vst.msk [vmem:[%s311 + $0x81] sm:$0xff] %vm261, %v306
        %324 = vst.msk [vmem:[%s311 + $0x91] sm:$0xff] %vm261, %v307
        %325 = vst.msk [vmem:[%s311 + $0x99] sm:$0xff] %vm261, %v308
        %326 = vst.msk [vmem:[%s311 + $0xa9] sm:$0xff] %vm261, %v309
        %327 = vst.msk [vmem:[%s311 + $0xb1] sm:$0xff] %vm261, %v310
        %p328 = scmp.gt.s32.totalorder %s27, 0
        // Predicated region
        $region49: #{tpu_custom_call.1} parent=35 // pred_check
          %p329 = pneg %p328
        $region50: #{tpu_custom_call.1} parent=35 // pred_check_branch
          %331 = sbr.rel (%p329) target = $region52
        $region51: #{tpu_custom_call.1} parent=35 // pred_region
          %s332 = ssub.s32 %s260, 1
          %s333 = smul.u32 %s332, 16
          %s334 = scalar_lea.vmem %s226, %s333 [#allocation3]
          %v335 = vld [vmem:[%s334] sm:$0xff]
          %v336 = vld [vmem:[%s334 + $0x8] sm:$0xff]
          %337 = vst.msk [vmem:[#allocation2 + $0x1] sm:$0xff] %vm261, %v335
          %338 = vst.msk [vmem:[#allocation2 + $0x9] sm:$0xff] %vm261, %v336
        $region52: #{tpu_custom_call.1} parent=35 // pred_fallthru
          _
        %p339 = scmp.lt.s32.totalorder %s27, 1
        // Predicated region
        $region53: #{tpu_custom_call.1} parent=35 // pred_check
          %p340 = pneg %p339
        $region54: #{tpu_custom_call.1} parent=35 // pred_check_branch
          %342 = sbr.rel (%p340) target = $region56
        $region55: #{tpu_custom_call.1} parent=35 // pred_region
          %s343 = sadd.s32 %s260, 8
          %s344 = smul.u32 %s343, 16
          %s345 = scalar_lea.vmem %s226, %s344 [#allocation3]
          %v346 = vld [vmem:[%s345] sm:$0xff]
          %v347 = vld [vmem:[%s345 + $0x8] sm:$0xff]
          %s348 = scalar_lea.vmem [#allocation2], 216
          %349 = vst.msk [vmem:[%s348 + $0x1] sm:$0xff] %vm261, %v346
          %350 = vst.msk [vmem:[%s348 + $0x9] sm:$0xff] %vm261, %v347
        $region56: #{tpu_custom_call.1} parent=35 // pred_fallthru
          _
        %v351 = vld [vmem:[#allocation6] sm:$0xff]
        %v352 = vld [vmem:[#allocation6 + $0x8] sm:$0x1]
        %v353 = vld [vmem:[#allocation2] sm:$0xff]
        %v354 = vld [vmem:[#allocation2 + $0x8] sm:$0xff]
        %v355 = vld [vmem:[#allocation2 + $0x18] sm:$0xff]
        %v356 = vld [vmem:[#allocation2 + $0x20] sm:$0xff]
        %v357 = vld [vmem:[#allocation2 + $0x30] sm:$0xff]
        %v358 = vld [vmem:[#allocation2 + $0x38] sm:$0xff]
        %v359 = vld [vmem:[#allocation2 + $0x48] sm:$0xff]
        %v360 = vld [vmem:[#allocation2 + $0x50] sm:$0xff]
        %v361 = vld [vmem:[#allocation2 + $0x60] sm:$0xff]
        %v362 = vld [vmem:[#allocation2 + $0x68] sm:$0xff]
        %v363 = vld [vmem:[#allocation2 + $0x78] sm:$0xff]
        %v364 = vld [vmem:[#allocation2 + $0x80] sm:$0xff]
        %v365 = vld [vmem:[#allocation2 + $0x90] sm:$0xff]
        %v366 = vld [vmem:[#allocation2 + $0x98] sm:$0xff]
        %v367 = vld [vmem:[#allocation2 + $0xa8] sm:$0xff]
        %v368 = vld [vmem:[#allocation2 + $0xb0] sm:$0xff]
        %v369 = vlaneseq
        %v370 = vshrl.u32 %v369, 7
        %v371 = vsub.s32 0, %v370
        %v372 = vrot.slane %v351, %v371
        %v373 = vmul.f32 %v353, %v372
        %v374 = vmul.f32 %v354, %v372
        %v375 = vmul.f32 %v355, %v372
        %v376 = vmul.f32 %v356, %v372
        %v377 = vmul.f32 %v357, %v372
        %v378 = vmul.f32 %v358, %v372
        %v379 = vmul.f32 %v359, %v372
        %v380 = vmul.f32 %v360, %v372
        %v381 = vmul.f32 %v361, %v372
        %v382 = vmul.f32 %v362, %v372
        %v383 = vmul.f32 %v363, %v372
        %v384 = vmul.f32 %v364, %v372
        %v385 = vmul.f32 %v365, %v372
        %v386 = vmul.f32 %v366, %v372
        %v387 = vmul.f32 %v367, %v372
        %v388 = vmul.f32 %v368, %v372
        %v389 = vadd.f32 %v373, 0.0
        %v390 = vadd.f32 %v374, 0.0
        %v391 = vadd.f32 %v375, 0.0
        %v392 = vadd.f32 %v376, 0.0
        %v393 = vadd.f32 %v377, 0.0
        %v394 = vadd.f32 %v378, 0.0
        %v395 = vadd.f32 %v379, 0.0
        %v396 = vadd.f32 %v380, 0.0
        %v397 = vadd.f32 %v381, 0.0
        %v398 = vadd.f32 %v382, 0.0
        %v399 = vadd.f32 %v383, 0.0
        %v400 = vadd.f32 %v384, 0.0
        %v401 = vadd.f32 %v385, 0.0
        %v402 = vadd.f32 %v386, 0.0
        %v403 = vadd.f32 %v387, 0.0
        %v404 = vadd.f32 %v388, 0.0
        %v405 = vld [vmem:[#allocation2 + $0x1] sm:$0xff]
        %v406 = vld [vmem:[#allocation2 + $0x9] sm:$0xff]
        %v407 = vld [vmem:[#allocation2 + $0x19] sm:$0xff]
        %v408 = vld [vmem:[#allocation2 + $0x21] sm:$0xff]
        %v409 = vld [vmem:[#allocation2 + $0x31] sm:$0xff]
        %v410 = vld [vmem:[#allocation2 + $0x39] sm:$0xff]
        %v411 = vld [vmem:[#allocation2 + $0x49] sm:$0xff]
        %v412 = vld [vmem:[#allocation2 + $0x51] sm:$0xff]
        %v413 = vld [vmem:[#allocation2 + $0x61] sm:$0xff]
        %v414 = vld [vmem:[#allocation2 + $0x69] sm:$0xff]
        %v415 = vld [vmem:[#allocation2 + $0x79] sm:$0xff]
        %v416 = vld [vmem:[#allocation2 + $0x81] sm:$0xff]
        %v417 = vld [vmem:[#allocation2 + $0x91] sm:$0xff]
        %v418 = vld [vmem:[#allocation2 + $0x99] sm:$0xff]
        %v419 = vld [vmem:[#allocation2 + $0xa9] sm:$0xff]
        %v420 = vld [vmem:[#allocation2 + $0xb1] sm:$0xff]
        %v421 = vlaneseq
        %v422 = vshrl.u32 %v421, 7
        %v423 = vsub.s32 1, %v422
        %v424 = vrot.slane %v351, %v423
        %v425 = vmul.f32 %v405, %v424
        %v426 = vmul.f32 %v406, %v424
        %v427 = vmul.f32 %v407, %v424
        %v428 = vmul.f32 %v408, %v424
        %v429 = vmul.f32 %v409, %v424
        %v430 = vmul.f32 %v410, %v424
        %v431 = vmul.f32 %v411, %v424
        %v432 = vmul.f32 %v412, %v424
        %v433 = vmul.f32 %v413, %v424
        %v434 = vmul.f32 %v414, %v424
        %v435 = vmul.f32 %v415, %v424
        %v436 = vmul.f32 %v416, %v424
        %v437 = vmul.f32 %v417, %v424
        %v438 = vmul.f32 %v418, %v424
        %v439 = vmul.f32 %v419, %v424
        %v440 = vmul.f32 %v420, %v424
        %v441 = vadd.f32 %v389, %v425
        %v442 = vadd.f32 %v390, %v426
        %v443 = vadd.f32 %v391, %v427
        %v444 = vadd.f32 %v392, %v428
        %v445 = vadd.f32 %v393, %v429
        %v446 = vadd.f32 %v394, %v430
        %v447 = vadd.f32 %v395, %v431
        %v448 = vadd.f32 %v396, %v432
        %v449 = vadd.f32 %v397, %v433
        %v450 = vadd.f32 %v398, %v434
        %v451 = vadd.f32 %v399, %v435
        %v452 = vadd.f32 %v400, %v436
        %v453 = vadd.f32 %v401, %v437
        %v454 = vadd.f32 %v402, %v438
        %v455 = vadd.f32 %v403, %v439
        %v456 = vadd.f32 %v404, %v440
        %v457 = vld [vmem:[#allocation2 + $0x2] sm:$0xff]
        %v458 = vld [vmem:[#allocation2 + $0xa] sm:$0xff]
        %v459 = vld [vmem:[#allocation2 + $0x1a] sm:$0xff]
        %v460 = vld [vmem:[#allocation2 + $0x22] sm:$0xff]
        %v461 = vld [vmem:[#allocation2 + $0x32] sm:$0xff]
        %v462 = vld [vmem:[#allocation2 + $0x3a] sm:$0xff]
        %v463 = vld [vmem:[#allocation2 + $0x4a] sm:$0xff]
        %v464 = vld [vmem:[#allocation2 + $0x52] sm:$0xff]
        %v465 = vld [vmem:[#allocation2 + $0x62] sm:$0xff]
        %v466 = vld [vmem:[#allocation2 + $0x6a] sm:$0xff]
        %v467 = vld [vmem:[#allocation2 + $0x7a] sm:$0xff]
        %v468 = vld [vmem:[#allocation2 + $0x82] sm:$0xff]
        %v469 = vld [vmem:[#allocation2 + $0x92] sm:$0xff]
        %v470 = vld [vmem:[#allocation2 + $0x9a] sm:$0xff]
        %v471 = vld [vmem:[#allocation2 + $0xaa] sm:$0xff]
        %v472 = vld [vmem:[#allocation2 + $0xb2] sm:$0xff]
        %v473 = vlaneseq
        %v474 = vshrl.u32 %v473, 7
        %v475 = vsub.s32 2, %v474
        %v476 = vrot.slane %v351, %v475
        %v477 = vmul.f32 %v457, %v476
        %v478 = vmul.f32 %v458, %v476
        %v479 = vmul.f32 %v459, %v476
        %v480 = vmul.f32 %v460, %v476
        %v481 = vmul.f32 %v461, %v476
        %v482 = vmul.f32 %v462, %v476
        %v483 = vmul.f32 %v463, %v476
        %v484 = vmul.f32 %v464, %v476
        %v485 = vmul.f32 %v465, %v476
        %v486 = vmul.f32 %v466, %v476
        %v487 = vmul.f32 %v467, %v476
        %v488 = vmul.f32 %v468, %v476
        %v489 = vmul.f32 %v469, %v476
        %v490 = vmul.f32 %v470, %v476
        %v491 = vmul.f32 %v471, %v476
        %v492 = vmul.f32 %v472, %v476
        %v493 = vadd.f32 %v441, %v477
        %v494 = vadd.f32 %v442, %v478
        %v495 = vadd.f32 %v443, %v479
        %v496 = vadd.f32 %v444, %v480
        %v497 = vadd.f32 %v445, %v481
        %v498 = vadd.f32 %v446, %v482
        %v499 = vadd.f32 %v447, %v483
        %v500 = vadd.f32 %v448, %v484
        %v501 = vadd.f32 %v449, %v485
        %v502 = vadd.f32 %v450, %v486
        %v503 = vadd.f32 %v451, %v487
        %v504 = vadd.f32 %v452, %v488
        %v505 = vadd.f32 %v453, %v489
        %v506 = vadd.f32 %v454, %v490
        %v507 = vadd.f32 %v455, %v491
        %v508 = vadd.f32 %v456, %v492
        %v509 = vld [vmem:[%s311] sm:$0xff]
        %v510 = vld [vmem:[%s311 + $0x8] sm:$0xff]
        %v511 = vld [vmem:[%s311 + $0x18] sm:$0xff]
        %v512 = vld [vmem:[%s311 + $0x20] sm:$0xff]
        %v513 = vld [vmem:[%s311 + $0x30] sm:$0xff]
        %v514 = vld [vmem:[%s311 + $0x38] sm:$0xff]
        %v515 = vld [vmem:[%s311 + $0x48] sm:$0xff]
        %v516 = vld [vmem:[%s311 + $0x50] sm:$0xff]
        %v517 = vld [vmem:[%s311 + $0x60] sm:$0xff]
        %v518 = vld [vmem:[%s311 + $0x68] sm:$0xff]
        %v519 = vld [vmem:[%s311 + $0x78] sm:$0xff]
        %v520 = vld [vmem:[%s311 + $0x80] sm:$0xff]
        %v521 = vld [vmem:[%s311 + $0x90] sm:$0xff]
        %v522 = vld [vmem:[%s311 + $0x98] sm:$0xff]
        %v523 = vld [vmem:[%s311 + $0xa8] sm:$0xff]
        %v524 = vld [vmem:[%s311 + $0xb0] sm:$0xff]
        %v525 = vlaneseq
        %v526 = vshrl.u32 %v525, 7
        %v527 = vsub.s32 3, %v526
        %v528 = vrot.slane %v351, %v527
        %v529 = vmul.f32 %v509, %v528
        %v530 = vmul.f32 %v510, %v528
        %v531 = vmul.f32 %v511, %v528
        %v532 = vmul.f32 %v512, %v528
        %v533 = vmul.f32 %v513, %v528
        %v534 = vmul.f32 %v514, %v528
        %v535 = vmul.f32 %v515, %v528
        %v536 = vmul.f32 %v516, %v528
        %v537 = vmul.f32 %v517, %v528
        %v538 = vmul.f32 %v518, %v528
        %v539 = vmul.f32 %v519, %v528
        %v540 = vmul.f32 %v520, %v528
        %v541 = vmul.f32 %v521, %v528
        %v542 = vmul.f32 %v522, %v528
        %v543 = vmul.f32 %v523, %v528
        %v544 = vmul.f32 %v524, %v528
        %v545 = vadd.f32 %v493, %v529
        %v546 = vadd.f32 %v494, %v530
        %v547 = vadd.f32 %v495, %v531
        %v548 = vadd.f32 %v496, %v532
        %v549 = vadd.f32 %v497, %v533
        %v550 = vadd.f32 %v498, %v534
        %v551 = vadd.f32 %v499, %v535
        %v552 = vadd.f32 %v500, %v536
        %v553 = vadd.f32 %v501, %v537
        %v554 = vadd.f32 %v502, %v538
        %v555 = vadd.f32 %v503, %v539
        %v556 = vadd.f32 %v504, %v540
        %v557 = vadd.f32 %v505, %v541
        %v558 = vadd.f32 %v506, %v542
        %v559 = vadd.f32 %v507, %v543
        %v560 = vadd.f32 %v508, %v544
        %v561 = vld [vmem:[%s311 + $0x1] sm:$0xff]
        %v562 = vld [vmem:[%s311 + $0x9] sm:$0xff]
        %v563 = vld [vmem:[%s311 + $0x19] sm:$0xff]
        %v564 = vld [vmem:[%s311 + $0x21] sm:$0xff]
        %v565 = vld [vmem:[%s311 + $0x31] sm:$0xff]
        %v566 = vld [vmem:[%s311 + $0x39] sm:$0xff]
        %v567 = vld [vmem:[%s311 + $0x49] sm:$0xff]
        %v568 = vld [vmem:[%s311 + $0x51] sm:$0xff]
        %v569 = vld [vmem:[%s311 + $0x61] sm:$0xff]
        %v570 = vld [vmem:[%s311 + $0x69] sm:$0xff]
        %v571 = vld [vmem:[%s311 + $0x79] sm:$0xff]
        %v572 = vld [vmem:[%s311 + $0x81] sm:$0xff]
        %v573 = vld [vmem:[%s311 + $0x91] sm:$0xff]
        %v574 = vld [vmem:[%s311 + $0x99] sm:$0xff]
        %v575 = vld [vmem:[%s311 + $0xa9] sm:$0xff]
        %v576 = vld [vmem:[%s311 + $0xb1] sm:$0xff]
        %v577 = vlaneseq
        %v578 = vshrl.u32 %v577, 7
        %v579 = vsub.s32 4, %v578
        %v580 = vrot.slane %v351, %v579
        %v581 = vmul.f32 %v561, %v580
        %v582 = vmul.f32 %v562, %v580
        %v583 = vmul.f32 %v563, %v580
        %v584 = vmul.f32 %v564, %v580
        %v585 = vmul.f32 %v565, %v580
        %v586 = vmul.f32 %v566, %v580
        %v587 = vmul.f32 %v567, %v580
        %v588 = vmul.f32 %v568, %v580
        %v589 = vmul.f32 %v569, %v580
        %v590 = vmul.f32 %v570, %v580
        %v591 = vmul.f32 %v571, %v580
        %v592 = vmul.f32 %v572, %v580
        %v593 = vmul.f32 %v573, %v580
        %v594 = vmul.f32 %v574, %v580
        %v595 = vmul.f32 %v575, %v580
        %v596 = vmul.f32 %v576, %v580
        %v597 = vadd.f32 %v545, %v581
        %v598 = vadd.f32 %v546, %v582
        %v599 = vadd.f32 %v547, %v583
        %v600 = vadd.f32 %v548, %v584
        %v601 = vadd.f32 %v549, %v585
        %v602 = vadd.f32 %v550, %v586
        %v603 = vadd.f32 %v551, %v587
        %v604 = vadd.f32 %v552, %v588
        %v605 = vadd.f32 %v553, %v589
        %v606 = vadd.f32 %v554, %v590
        %v607 = vadd.f32 %v555, %v591
        %v608 = vadd.f32 %v556, %v592
        %v609 = vadd.f32 %v557, %v593
        %v610 = vadd.f32 %v558, %v594
        %v611 = vadd.f32 %v559, %v595
        %v612 = vadd.f32 %v560, %v596
        %v613 = vld [vmem:[%s311 + $0x2] sm:$0xff]
        %v614 = vld [vmem:[%s311 + $0xa] sm:$0xff]
        %v615 = vld [vmem:[%s311 + $0x1a] sm:$0xff]
        %v616 = vld [vmem:[%s311 + $0x22] sm:$0xff]
        %v617 = vld [vmem:[%s311 + $0x32] sm:$0xff]
        %v618 = vld [vmem:[%s311 + $0x3a] sm:$0xff]
        %v619 = vld [vmem:[%s311 + $0x4a] sm:$0xff]
        %v620 = vld [vmem:[%s311 + $0x52] sm:$0xff]
        %v621 = vld [vmem:[%s311 + $0x62] sm:$0xff]
        %v622 = vld [vmem:[%s311 + $0x6a] sm:$0xff]
        %v623 = vld [vmem:[%s311 + $0x7a] sm:$0xff]
        %v624 = vld [vmem:[%s311 + $0x82] sm:$0xff]
        %v625 = vld [vmem:[%s311 + $0x92] sm:$0xff]
        %v626 = vld [vmem:[%s311 + $0x9a] sm:$0xff]
        %v627 = vld [vmem:[%s311 + $0xaa] sm:$0xff]
        %v628 = vld [vmem:[%s311 + $0xb2] sm:$0xff]
        %v629 = vlaneseq
        %v630 = vshrl.u32 %v629, 7
        %v631 = vsub.s32 5, %v630
        %v632 = vrot.slane %v351, %v631
        %v633 = vmul.f32 %v613, %v632
        %v634 = vmul.f32 %v614, %v632
        %v635 = vmul.f32 %v615, %v632
        %v636 = vmul.f32 %v616, %v632
        %v637 = vmul.f32 %v617, %v632
        %v638 = vmul.f32 %v618, %v632
        %v639 = vmul.f32 %v619, %v632
        %v640 = vmul.f32 %v620, %v632
        %v641 = vmul.f32 %v621, %v632
        %v642 = vmul.f32 %v622, %v632
        %v643 = vmul.f32 %v623, %v632
        %v644 = vmul.f32 %v624, %v632
        %v645 = vmul.f32 %v625, %v632
        %v646 = vmul.f32 %v626, %v632
        %v647 = vmul.f32 %v627, %v632
        %v648 = vmul.f32 %v628, %v632
        %v649 = vadd.f32 %v597, %v633
        %v650 = vadd.f32 %v598, %v634
        %v651 = vadd.f32 %v599, %v635
        %v652 = vadd.f32 %v600, %v636
        %v653 = vadd.f32 %v601, %v637
        %v654 = vadd.f32 %v602, %v638
        %v655 = vadd.f32 %v603, %v639
        %v656 = vadd.f32 %v604, %v640
        %v657 = vadd.f32 %v605, %v641
        %v658 = vadd.f32 %v606, %v642
        %v659 = vadd.f32 %v607, %v643
        %v660 = vadd.f32 %v608, %v644
        %v661 = vadd.f32 %v609, %v645
        %v662 = vadd.f32 %v610, %v646
        %v663 = vadd.f32 %v611, %v647
        %v664 = vadd.f32 %v612, %v648
        %s665 = scalar_lea.vmem [#allocation2], 48
        %v666 = vld [vmem:[%s665] sm:$0xff]
        %v667 = vld [vmem:[%s665 + $0x8] sm:$0xff]
        %v668 = vld [vmem:[%s665 + $0x18] sm:$0xff]
        %v669 = vld [vmem:[%s665 + $0x20] sm:$0xff]
        %v670 = vld [vmem:[%s665 + $0x30] sm:$0xff]
        %v671 = vld [vmem:[%s665 + $0x38] sm:$0xff]
        %v672 = vld [vmem:[%s665 + $0x48] sm:$0xff]
        %v673 = vld [vmem:[%s665 + $0x50] sm:$0xff]
        %v674 = vld [vmem:[%s665 + $0x60] sm:$0xff]
        %v675 = vld [vmem:[%s665 + $0x68] sm:$0xff]
        %v676 = vld [vmem:[%s665 + $0x78] sm:$0xff]
        %v677 = vld [vmem:[%s665 + $0x80] sm:$0xff]
        %v678 = vld [vmem:[%s665 + $0x90] sm:$0xff]
        %v679 = vld [vmem:[%s665 + $0x98] sm:$0xff]
        %v680 = vld [vmem:[%s665 + $0xa8] sm:$0xff]
        %v681 = vld [vmem:[%s665 + $0xb0] sm:$0xff]
        %v682 = vlaneseq
        %v683 = vshrl.u32 %v682, 7
        %v684 = vsub.s32 6, %v683
        %v685 = vrot.slane %v351, %v684
        %v686 = vmul.f32 %v666, %v685
        %v687 = vmul.f32 %v667, %v685
        %v688 = vmul.f32 %v668, %v685
        %v689 = vmul.f32 %v669, %v685
        %v690 = vmul.f32 %v670, %v685
        %v691 = vmul.f32 %v671, %v685
        %v692 = vmul.f32 %v672, %v685
        %v693 = vmul.f32 %v673, %v685
        %v694 = vmul.f32 %v674, %v685
        %v695 = vmul.f32 %v675, %v685
        %v696 = vmul.f32 %v676, %v685
        %v697 = vmul.f32 %v677, %v685
        %v698 = vmul.f32 %v678, %v685
        %v699 = vmul.f32 %v679, %v685
        %v700 = vmul.f32 %v680, %v685
        %v701 = vmul.f32 %v681, %v685
        %v702 = vadd.f32 %v649, %v686
        %v703 = vadd.f32 %v650, %v687
        %v704 = vadd.f32 %v651, %v688
        %v705 = vadd.f32 %v652, %v689
        %v706 = vadd.f32 %v653, %v690
        %v707 = vadd.f32 %v654, %v691
        %v708 = vadd.f32 %v655, %v692
        %v709 = vadd.f32 %v656, %v693
        %v710 = vadd.f32 %v657, %v694
        %v711 = vadd.f32 %v658, %v695
        %v712 = vadd.f32 %v659, %v696
        %v713 = vadd.f32 %v660, %v697
        %v714 = vadd.f32 %v661, %v698
        %v715 = vadd.f32 %v662, %v699
        %v716 = vadd.f32 %v663, %v700
        %v717 = vadd.f32 %v664, %v701
        %v718 = vld [vmem:[%s665 + $0x1] sm:$0xff]
        %v719 = vld [vmem:[%s665 + $0x9] sm:$0xff]
        %v720 = vld [vmem:[%s665 + $0x19] sm:$0xff]
        %v721 = vld [vmem:[%s665 + $0x21] sm:$0xff]
        %v722 = vld [vmem:[%s665 + $0x31] sm:$0xff]
        %v723 = vld [vmem:[%s665 + $0x39] sm:$0xff]
        %v724 = vld [vmem:[%s665 + $0x49] sm:$0xff]
        %v725 = vld [vmem:[%s665 + $0x51] sm:$0xff]
        %v726 = vld [vmem:[%s665 + $0x61] sm:$0xff]
        %v727 = vld [vmem:[%s665 + $0x69] sm:$0xff]
        %v728 = vld [vmem:[%s665 + $0x79] sm:$0xff]
        %v729 = vld [vmem:[%s665 + $0x81] sm:$0xff]
        %v730 = vld [vmem:[%s665 + $0x91] sm:$0xff]
        %v731 = vld [vmem:[%s665 + $0x99] sm:$0xff]
        %v732 = vld [vmem:[%s665 + $0xa9] sm:$0xff]
        %v733 = vld [vmem:[%s665 + $0xb1] sm:$0xff]
        %v734 = vlaneseq
        %v735 = vshrl.u32 %v734, 7
        %v736 = vsub.s32 7, %v735
        %v737 = vrot.slane %v351, %v736
        %v738 = vmul.f32 %v718, %v737
        %v739 = vmul.f32 %v719, %v737
        %v740 = vmul.f32 %v720, %v737
        %v741 = vmul.f32 %v721, %v737
        %v742 = vmul.f32 %v722, %v737
        %v743 = vmul.f32 %v723, %v737
        %v744 = vmul.f32 %v724, %v737
        %v745 = vmul.f32 %v725, %v737
        %v746 = vmul.f32 %v726, %v737
        %v747 = vmul.f32 %v727, %v737
        %v748 = vmul.f32 %v728, %v737
        %v749 = vmul.f32 %v729, %v737
        %v750 = vmul.f32 %v730, %v737
        %v751 = vmul.f32 %v731, %v737
        %v752 = vmul.f32 %v732, %v737
        %v753 = vmul.f32 %v733, %v737
        %v754 = vadd.f32 %v702, %v738
        %v755 = vadd.f32 %v703, %v739
        %v756 = vadd.f32 %v704, %v740
        %v757 = vadd.f32 %v705, %v741
        %v758 = vadd.f32 %v706, %v742
        %v759 = vadd.f32 %v707, %v743
        %v760 = vadd.f32 %v708, %v744
        %v761 = vadd.f32 %v709, %v745
        %v762 = vadd.f32 %v710, %v746
        %v763 = vadd.f32 %v711, %v747
        %v764 = vadd.f32 %v712, %v748
        %v765 = vadd.f32 %v713, %v749
        %v766 = vadd.f32 %v714, %v750
        %v767 = vadd.f32 %v715, %v751
        %v768 = vadd.f32 %v716, %v752
        %v769 = vadd.f32 %v717, %v753
        %v770 = vld [vmem:[%s665 + $0x2] sm:$0xff]
        %v771 = vld [vmem:[%s665 + $0xa] sm:$0xff]
        %v772 = vld [vmem:[%s665 + $0x1a] sm:$0xff]
        %v773 = vld [vmem:[%s665 + $0x22] sm:$0xff]
        %v774 = vld [vmem:[%s665 + $0x32] sm:$0xff]
        %v775 = vld [vmem:[%s665 + $0x3a] sm:$0xff]
        %v776 = vld [vmem:[%s665 + $0x4a] sm:$0xff]
        %v777 = vld [vmem:[%s665 + $0x52] sm:$0xff]
        %v778 = vld [vmem:[%s665 + $0x62] sm:$0xff]
        %v779 = vld [vmem:[%s665 + $0x6a] sm:$0xff]
        %v780 = vld [vmem:[%s665 + $0x7a] sm:$0xff]
        %v781 = vld [vmem:[%s665 + $0x82] sm:$0xff]
        %v782 = vld [vmem:[%s665 + $0x92] sm:$0xff]
        %v783 = vld [vmem:[%s665 + $0x9a] sm:$0xff]
        %v784 = vld [vmem:[%s665 + $0xaa] sm:$0xff]
        %v785 = vld [vmem:[%s665 + $0xb2] sm:$0xff]
        %v786 = vlaneseq
        %v787 = vshrl.u32 %v786, 7
        %v788 = vsub.s32 0, %v787
        %v789 = vrot.slane %v352, %v788
        %v790 = vmul.f32 %v770, %v789
        %v791 = vmul.f32 %v771, %v789
        %v792 = vmul.f32 %v772, %v789
        %v793 = vmul.f32 %v773, %v789
        %v794 = vmul.f32 %v774, %v789
        %v795 = vmul.f32 %v775, %v789
        %v796 = vmul.f32 %v776, %v789
        %v797 = vmul.f32 %v777, %v789
        %v798 = vmul.f32 %v778, %v789
        %v799 = vmul.f32 %v779, %v789
        %v800 = vmul.f32 %v780, %v789
        %v801 = vmul.f32 %v781, %v789
        %v802 = vmul.f32 %v782, %v789
        %v803 = vmul.f32 %v783, %v789
        %v804 = vmul.f32 %v784, %v789
        %v805 = vmul.f32 %v785, %v789
        %v806 = vadd.f32 %v754, %v790
        %v807 = vadd.f32 %v755, %v791
        %v808 = vadd.f32 %v756, %v792
        %v809 = vadd.f32 %v757, %v793
        %v810 = vadd.f32 %v758, %v794
        %v811 = vadd.f32 %v759, %v795
        %v812 = vadd.f32 %v760, %v796
        %v813 = vadd.f32 %v761, %v797
        %v814 = vadd.f32 %v762, %v798
        %v815 = vadd.f32 %v763, %v799
        %v816 = vadd.f32 %v764, %v800
        %v817 = vadd.f32 %v765, %v801
        %v818 = vadd.f32 %v766, %v802
        %v819 = vadd.f32 %v767, %v803
        %v820 = vadd.f32 %v768, %v804
        %v821 = vadd.f32 %v769, %v805
        %v822 = vld [vmem:[#allocation8] sm:$0xff]
        %v823 = vld [vmem:[#allocation8 + $0x8] sm:$0xff]
        %v824 = vld [vmem:[#allocation8 + $0x10] sm:$0xff]
        %v825 = vld [vmem:[#allocation8 + $0x18] sm:$0xff]
        %v827 = vsel %vm261, %v806, 0
        %v830 = vsel %vm261, %v807, 0
        %v833 = vsel %vm261, %v808, 0
        %v836 = vsel %vm261, %v809, 0
        %v839 = vsel %vm261, %v810, 0
        %v842 = vsel %vm261, %v811, 0
        %v845 = vsel %vm261, %v812, 0
        %v848 = vsel %vm261, %v813, 0
        %v851 = vsel %vm261, %v814, 0
        %v854 = vsel %vm261, %v815, 0
        %v857 = vsel %vm261, %v816, 0
        %v860 = vsel %vm261, %v817, 0
        %v863 = vsel %vm261, %v818, 0
        %v866 = vsel %vm261, %v819, 0
        %v869 = vsel %vm261, %v820, 0
        %v872 = vsel %vm261, %v821, 0
        %874 = vmatprep.subr.mxu0 0.0
        %v875 = vand.u32 %v822, 4294901760
        %876 = vmatpush1.msra.mxu0 %v875
        %877 = vmatprep.subr.mxu0 0.0
        %v878 = vand.u32 %v823, 4294901760
        %879 = vmatpush1.msra.mxu0 %v878
        %880 = vmatprep.subr.mxu0 0.0
        %v881 = vand.u32 %v824, 4294901760
        %882 = vmatpush1.msra.mxu0 %v881
        %883 = vmatprep.subr.mxu0 0.0
        %v884 = vand.u32 %v825, 4294901760
        %885 = vmatpush1.msra.mxu0 %v884
        %886 = vmatprep.subr.mxu0 0.0
        %887 = vmatpush1.msra.mxu0 0.0
        %888 = vmatprep.subr.mxu0 0.0
        %889 = vmatpush1.msra.mxu0 0.0
        %890 = vmatprep.subr.mxu0 0.0
        %891 = vmatpush1.msra.mxu0 0.0
        %892 = vmatprep.subr.mxu0 0.0
        %893 = vmatpush1.msra.mxu0 0.0
        %894 = vmatprep.subr.mxu0 0.0
        %895 = vmatpush1.msra.mxu0 0.0
        %896 = vmatprep.subr.mxu0 0.0
        %897 = vmatpush1.msra.mxu0 0.0
        %898 = vmatprep.subr.mxu0 0.0
        %899 = vmatpush1.msra.mxu0 0.0
        %900 = vmatprep.subr.mxu0 0.0
        %901 = vmatpush1.msra.mxu0 0.0
        %902 = vmatprep.subr.mxu0 0.0
        %903 = vmatpush1.msra.mxu0 0.0
        %904 = vmatprep.subr.mxu0 0.0
        %905 = vmatpush1.msra.mxu0 0.0
        %906 = vmatprep.subr.mxu0 0.0
        %907 = vmatpush1.msra.mxu0 0.0
        %908 = vmatprep.subr.mxu0 0.0
        %909 = vmatpush1.msra.mxu0 0.0
        %910 = vmatprep.subr.mxu0 0.0
        %911 = vmatpush1.msra.mxu0 0.0
        %912 = vmatprep.subr.mxu0 0.0
        %913 = vmatpush1.msra.mxu0 0.0
        %914 = vmatprep.subr.mxu0 0.0
        %915 = vmatpush1.msra.mxu0 0.0
        %916 = vmatprep.subr.mxu0 0.0
        %917 = vmatpush1.msra.mxu0 0.0
        %918 = vmatprep.subr.mxu0 0.0
        %919 = vmatpush1.msra.mxu0 0.0
        %920 = vmatprep.subr.mxu0 0.0
        %921 = vmatpush1.msra.mxu0 0.0
        %922 = vmatprep.subr.mxu0 0.0
        %923 = vmatpush1.msra.mxu0 0.0
        %924 = vmatprep.subr.mxu0 0.0
        %925 = vmatpush1.msra.mxu0 0.0
        %926 = vmatprep.subr.mxu0 0.0
        %927 = vmatpush1.msra.mxu0 0.0
        %928 = vmatprep.subr.mxu0 0.0
        %929 = vmatpush1.msra.mxu0 0.0
        %930 = vmatprep.subr.mxu0 0.0
        %931 = vmatpush1.msra.mxu0 0.0
        %932 = vmatprep.subr.mxu0 0.0
        %933 = vmatpush1.msra.mxu0 0.0
        %934 = vmatprep.subr.mxu0 0.0
        %935 = vmatpush1.msra.mxu0 0.0
        %936 = vmatprep.subr.mxu0 0.0
        %937 = vmatpush1.msra.mxu0 0.0
        %938 = vmatprep.subr.mxu0 0.0
        %939 = vmatpush1.msra.mxu0 0.0
        %940 = vmatprep.subr.mxu0 0.0
        %941 = vmatpush1.msra.mxu0 0.0
        %942 = vmatprep.mubr.f32.mxu0 0.0
        %v943 = vand.u32 %v827, 4294901760
        %v944 = vsub.f32 %v827, %v943
        %v945 = vand.u32 %v944, 4294901760
        %v946 = vsub.f32 %v944, %v945
        %v947 = vand.u32 %v946, 4294901760
        %948 = vmatmul.mubr.f32.gmra.mrb[0].mxu0 %v947
        %v949 = vpop.f32.mrb[0].mxu0
        %v950 = vadd.f32 0.0, %v949
        %v951 = vpop.f32.mrb[0].mxu0
        %952 = vmatprep.mubr.f32.mxu0 0.0
        %v953 = vand.u32 %v830, 4294901760
        %v954 = vsub.f32 %v830, %v953
        %v955 = vand.u32 %v954, 4294901760
        %v956 = vsub.f32 %v954, %v955
        %v957 = vand.u32 %v956, 4294901760
        %958 = vmatmul.mubr.f32.gmra.mrb[0].mxu0 %v957
        %v959 = vpop.f32.mrb[0].mxu0
        %v960 = vadd.f32 0.0, %v959
        %v961 = vpop.f32.mrb[0].mxu0
        %962 = vmatprep.mubr.f32.mxu0 0.0
        %v963 = vand.u32 %v833, 4294901760
        %v964 = vsub.f32 %v833, %v963
        %v965 = vand.u32 %v964, 4294901760
        %v966 = vsub.f32 %v964, %v965
        %v967 = vand.u32 %v966, 4294901760
        %968 = vmatmul.mubr.f32.gmra.mrb[0].mxu0 %v967
        %v969 = vpop.f32.mrb[0].mxu0
        %v970 = vadd.f32 0.0, %v969
        %v971 = vpop.f32.mrb[0].mxu0
        %972 = vmatprep.mubr.f32.mxu0 0.0
        %v973 = vand.u32 %v836, 4294901760
        %v974 = vsub.f32 %v836, %v973
        %v975 = vand.u32 %v974, 4294901760
        %v976 = vsub.f32 %v974, %v975
        %v977 = vand.u32 %v976, 4294901760
        %978 = vmatmul.mubr.f32.gmra.mrb[0].mxu0 %v977
        %v979 = vpop.f32.mrb[0].mxu0
        %v980 = vadd.f32 0.0, %v979
        %v981 = vpop.f32.mrb[0].mxu0
        %982 = vmatprep.mubr.f32.mxu0 0.0
        %v983 = vand.u32 %v839, 4294901760
        %v984 = vsub.f32 %v839, %v983
        %v985 = vand.u32 %v984, 4294901760
        %v986 = vsub.f32 %v984, %v985
        %v987 = vand.u32 %v986, 4294901760
        %988 = vmatmul.mubr.f32.gmra.mrb[0].mxu0 %v987
        %v989 = vpop.f32.mrb[0].mxu0
        %v990 = vadd.f32 0.0, %v989
        %v991 = vpop.f32.mrb[0].mxu0
        %992 = vmatprep.mubr.f32.mxu0 0.0
        %v993 = vand.u32 %v842, 4294901760
        %v994 = vsub.f32 %v842, %v993
        %v995 = vand.u32 %v994, 4294901760
        %v996 = vsub.f32 %v994, %v995
        %v997 = vand.u32 %v996, 4294901760
        %998 = vmatmul.mubr.f32.gmra.mrb[0].mxu0 %v997
        %v999 = vpop.f32.mrb[0].mxu0
        %v1000 = vadd.f32 0.0, %v999
        %v1001 = vpop.f32.mrb[0].mxu0
        %1002 = vmatprep.mubr.f32.mxu0 0.0
        %v1003 = vand.u32 %v845, 4294901760
        %v1004 = vsub.f32 %v845, %v1003
        %v1005 = vand.u32 %v1004, 4294901760
        %v1006 = vsub.f32 %v1004, %v1005
        %v1007 = vand.u32 %v1006, 4294901760
        %1008 = vmatmul.mubr.f32.gmra.mrb[0].mxu0 %v1007
        %v1009 = vpop.f32.mrb[0].mxu0
        %v1010 = vadd.f32 0.0, %v1009
        %v1011 = vpop.f32.mrb[0].mxu0
        %1012 = vmatprep.mubr.f32.mxu0 0.0
        %v1013 = vand.u32 %v848, 4294901760
        %v1014 = vsub.f32 %v848, %v1013
        %v1015 = vand.u32 %v1014, 4294901760
        %v1016 = vsub.f32 %v1014, %v1015
        %v1017 = vand.u32 %v1016, 4294901760
        %1018 = vmatmul.mubr.f32.gmra.mrb[0].mxu0 %v1017
        %v1019 = vpop.f32.mrb[0].mxu0
        %v1020 = vadd.f32 0.0, %v1019
        %v1021 = vpop.f32.mrb[0].mxu0
        %1022 = vmatprep.mubr.f32.mxu0 0.0
        %v1023 = vand.u32 %v851, 4294901760
        %v1024 = vsub.f32 %v851, %v1023
        %v1025 = vand.u32 %v1024, 4294901760
        %v1026 = vsub.f32 %v1024, %v1025
        %v1027 = vand.u32 %v1026, 4294901760
        %1028 = vmatmul.mubr.f32.gmra.mrb[0].mxu0 %v1027
        %v1029 = vpop.f32.mrb[0].mxu0
        %v1030 = vadd.f32 0.0, %v1029
        %v1031 = vpop.f32.mrb[0].mxu0
        %1032 = vmatprep.mubr.f32.mxu0 0.0
        %v1033 = vand.u32 %v854, 4294901760
        %v1034 = vsub.f32 %v854, %v1033
        %v1035 = vand.u32 %v1034, 4294901760
        %v1036 = vsub.f32 %v1034, %v1035
        %v1037 = vand.u32 %v1036, 4294901760
        %1038 = vmatmul.mubr.f32.gmra.mrb[0].mxu0 %v1037
        %v1039 = vpop.f32.mrb[0].mxu0
        %v1040 = vadd.f32 0.0, %v1039
        %v1041 = vpop.f32.mrb[0].mxu0
        %1042 = vmatprep.mubr.f32.mxu0 0.0
        %v1043 = vand.u32 %v857, 4294901760
        %v1044 = vsub.f32 %v857, %v1043
        %v1045 = vand.u32 %v1044, 4294901760
        %v1046 = vsub.f32 %v1044, %v1045
        %v1047 = vand.u32 %v1046, 4294901760
        %1048 = vmatmul.mubr.f32.gmra.mrb[0].mxu0 %v1047
        %v1049 = vpop.f32.mrb[0].mxu0
        %v1050 = vadd.f32 0.0, %v1049
        %v1051 = vpop.f32.mrb[0].mxu0
        %1052 = vmatprep.mubr.f32.mxu0 0.0
        %v1053 = vand.u32 %v860, 4294901760
        %v1054 = vsub.f32 %v860, %v1053
        %v1055 = vand.u32 %v1054, 4294901760
        %v1056 = vsub.f32 %v1054, %v1055
        %v1057 = vand.u32 %v1056, 4294901760
        %1058 = vmatmul.mubr.f32.gmra.mrb[0].mxu0 %v1057
        %v1059 = vpop.f32.mrb[0].mxu0
        %v1060 = vadd.f32 0.0, %v1059
        %v1061 = vpop.f32.mrb[0].mxu0
        %1062 = vmatprep.mubr.f32.mxu0 0.0
        %v1063 = vand.u32 %v863, 4294901760
        %v1064 = vsub.f32 %v863, %v1063
        %v1065 = vand.u32 %v1064, 4294901760
        %v1066 = vsub.f32 %v1064, %v1065
        %v1067 = vand.u32 %v1066, 4294901760
        %1068 = vmatmul.mubr.f32.gmra.mrb[0].mxu0 %v1067
        %v1069 = vpop.f32.mrb[0].mxu0
        %v1070 = vadd.f32 0.0, %v1069
        %v1071 = vpop.f32.mrb[0].mxu0
        %1072 = vmatprep.mubr.f32.mxu0 0.0
        %v1073 = vand.u32 %v866, 4294901760
        %v1074 = vsub.f32 %v866, %v1073
        %v1075 = vand.u32 %v1074, 4294901760
        %v1076 = vsub.f32 %v1074, %v1075
        %v1077 = vand.u32 %v1076, 4294901760
        %1078 = vmatmul.mubr.f32.gmra.mrb[0].mxu0 %v1077
        %v1079 = vpop.f32.mrb[0].mxu0
        %v1080 = vadd.f32 0.0, %v1079
        %v1081 = vpop.f32.mrb[0].mxu0
        %1082 = vmatprep.mubr.f32.mxu0 0.0
        %v1083 = vand.u32 %v869, 4294901760
        %v1084 = vsub.f32 %v869, %v1083
        %v1085 = vand.u32 %v1084, 4294901760
        %v1086 = vsub.f32 %v1084, %v1085
        %v1087 = vand.u32 %v1086, 4294901760
        %1088 = vmatmul.mubr.f32.gmra.mrb[0].mxu0 %v1087
        %v1089 = vpop.f32.mrb[0].mxu0
        %v1090 = vadd.f32 0.0, %v1089
        %v1091 = vpop.f32.mrb[0].mxu0
        %1092 = vmatprep.mubr.f32.mxu0 0.0
        %v1093 = vand.u32 %v872, 4294901760
        %v1094 = vsub.f32 %v872, %v1093
        %v1095 = vand.u32 %v1094, 4294901760
        %v1096 = vsub.f32 %v1094, %v1095
        %v1097 = vand.u32 %v1096, 4294901760
        %1098 = vmatmul.mubr.f32.gmra.mrb[0].mxu0 %v1097
        %v1099 = vpop.f32.mrb[0].mxu0
        %v1100 = vadd.f32 0.0, %v1099
        %v1101 = vpop.f32.mrb[0].mxu0
        %1102 = vdwg.mxu0
        %1103 = vmatprep.subr.mxu0 0.0
        %v1104 = vand.u32 %v822, 4294901760
        %v1105 = vsub.f32 %v822, %v1104
        %v1106 = vand.u32 %v1105, 4294901760
        %v1107 = vsub.f32 %v1105, %v1106
        %v1108 = vand.u32 %v1107, 4294901760
        %1109 = vmatpush1.msra.mxu0 %v1108
        %1110 = vmatprep.subr.mxu0 0.0
        %v1111 = vand.u32 %v823, 4294901760
        %v1112 = vsub.f32 %v823, %v1111
        %v1113 = vand.u32 %v1112, 4294901760
        %v1114 = vsub.f32 %v1112, %v1113
        %v1115 = vand.u32 %v1114, 4294901760
        %1116 = vmatpush1.msra.mxu0 %v1115
        %1117 = vmatprep.subr.mxu0 0.0
        %v1118 = vand.u32 %v824, 4294901760
        %v1119 = vsub.f32 %v824, %v1118
        %v1120 = vand.u32 %v1119, 4294901760
        %v1121 = vsub.f32 %v1119, %v1120
        %v1122 = vand.u32 %v1121, 4294901760
        %1123 = vmatpush1.msra.mxu0 %v1122
        %1124 = vmatprep.subr.mxu0 0.0
        %v1125 = vand.u32 %v825, 4294901760
        %v1126 = vsub.f32 %v825, %v1125
        %v1127 = vand.u32 %v1126, 4294901760
        %v1128 = vsub.f32 %v1126, %v1127
        %v1129 = vand.u32 %v1128, 4294901760
        %1130 = vmatpush1.msra.mxu0 %v1129
        %1131 = vmatprep.subr.mxu0 0.0
        %1132 = vmatpush1.msra.mxu0 0.0
        %1133 = vmatprep.subr.mxu0 0.0
        %1134 = vmatpush1.msra.mxu0 0.0
        %1135 = vmatprep.subr.mxu0 0.0
        %1136 = vmatpush1.msra.mxu0 0.0
        %1137 = vmatprep.subr.mxu0 0.0
        %1138 = vmatpush1.msra.mxu0 0.0
        %1139 = vmatprep.subr.mxu0 0.0
        %1140 = vmatpush1.msra.mxu0 0.0
        %1141 = vmatprep.subr.mxu0 0.0
        %1142 = vmatpush1.msra.mxu0 0.0
        %1143 = vmatprep.subr.mxu0 0.0
        %1144 = vmatpush1.msra.mxu0 0.0
        %1145 = vmatprep.subr.mxu0 0.0
        %1146 = vmatpush1.msra.mxu0 0.0
        %1147 = vmatprep.subr.mxu0 0.0
        %1148 = vmatpush1.msra.mxu0 0.0
        %1149 = vmatprep.subr.mxu0 0.0
        %1150 = vmatpush1.msra.mxu0 0.0
        %1151 = vmatprep.subr.mxu0 0.0
        %1152 = vmatpush1.msra.mxu0 0.0
        %1153 = vmatprep.subr.mxu0 0.0
        %1154 = vmatpush1.msra.mxu0 0.0
        %1155 = vmatprep.subr.mxu0 0.0
        %1156 = vmatpush1.msra.mxu0 0.0
        %1157 = vmatprep.subr.mxu0 0.0
        %1158 = vmatpush1.msra.mxu0 0.0
        %1159 = vmatprep.subr.mxu0 0.0
        %1160 = vmatpush1.msra.mxu0 0.0
        %1161 = vmatprep.subr.mxu0 0.0
        %1162 = vmatpush1.msra.mxu0 0.0
        %1163 = vmatprep.subr.mxu0 0.0
        %1164 = vmatpush1.msra.mxu0 0.0
        %1165 = vmatprep.subr.mxu0 0.0
        %1166 = vmatpush1.msra.mxu0 0.0
        %1167 = vmatprep.subr.mxu0 0.0
        %1168 = vmatpush1.msra.mxu0 0.0
        %1169 = vmatprep.subr.mxu0 0.0
        %1170 = vmatpush1.msra.mxu0 0.0
        %1171 = vmatprep.subr.mxu0 0.0
        %1172 = vmatpush1.msra.mxu0 0.0
        %1173 = vmatprep.subr.mxu0 0.0
        %1174 = vmatpush1.msra.mxu0 0.0
        %1175 = vmatprep.subr.mxu0 0.0
        %1176 = vmatpush1.msra.mxu0 0.0
        %1177 = vmatprep.subr.mxu0 0.0
        %1178 = vmatpush1.msra.mxu0 0.0
        %1179 = vmatprep.subr.mxu0 0.0
        %1180 = vmatpush1.msra.mxu0 0.0
        %1181 = vmatprep.subr.mxu0 0.0
        %1182 = vmatpush1.msra.mxu0 0.0
        %1183 = vmatprep.subr.mxu0 0.0
        %1184 = vmatpush1.msra.mxu0 0.0
        %1185 = vmatprep.subr.mxu0 0.0
        %1186 = vmatpush1.msra.mxu0 0.0
        %1187 = vmatprep.mubr.f32.mxu0 0.0
        %v1188 = vand.u32 %v827, 4294901760
        %1189 = vmatmul.mubr.f32.gmra.mrb[0].mxu0 %v1188
        %v1190 = vpop.f32.mrb[0].mxu0
        %v1191 = vadd.f32 %v950, %v1190
        %v1192 = vpop.f32.mrb[0].mxu0
        %1193 = vmatprep.mubr.f32.mxu0 0.0
        %v1194 = vand.u32 %v830, 4294901760
        %1195 = vmatmul.mubr.f32.gmra.mrb[0].mxu0 %v1194
        %v1196 = vpop.f32.mrb[0].mxu0
        %v1197 = vadd.f32 %v960, %v1196
        %v1198 = vpop.f32.mrb[0].mxu0
        %1199 = vmatprep.mubr.f32.mxu0 0.0
        %v1200 = vand.u32 %v833, 4294901760
        %1201 = vmatmul.mubr.f32.gmra.mrb[0].mxu0 %v1200
        %v1202 = vpop.f32.mrb[0].mxu0
        %v1203 = vadd.f32 %v970, %v1202
        %v1204 = vpop.f32.mrb[0].mxu0
        %1205 = vmatprep.mubr.f32.mxu0 0.0
        %v1206 = vand.u32 %v836, 4294901760
        %1207 = vmatmul.mubr.f32.gmra.mrb[0].mxu0 %v1206
        %v1208 = vpop.f32.mrb[0].mxu0
        %v1209 = vadd.f32 %v980, %v1208
        %v1210 = vpop.f32.mrb[0].mxu0
        %1211 = vmatprep.mubr.f32.mxu0 0.0
        %v1212 = vand.u32 %v839, 4294901760
        %1213 = vmatmul.mubr.f32.gmra.mrb[0].mxu0 %v1212
        %v1214 = vpop.f32.mrb[0].mxu0
        %v1215 = vadd.f32 %v990, %v1214
        %v1216 = vpop.f32.mrb[0].mxu0
        %1217 = vmatprep.mubr.f32.mxu0 0.0
        %v1218 = vand.u32 %v842, 4294901760
        %1219 = vmatmul.mubr.f32.gmra.mrb[0].mxu0 %v1218
        %v1220 = vpop.f32.mrb[0].mxu0
        %v1221 = vadd.f32 %v1000, %v1220
        %v1222 = vpop.f32.mrb[0].mxu0
        %1223 = vmatprep.mubr.f32.mxu0 0.0
        %v1224 = vand.u32 %v845, 4294901760
        %1225 = vmatmul.mubr.f32.gmra.mrb[0].mxu0 %v1224
        %v1226 = vpop.f32.mrb[0].mxu0
        %v1227 = vadd.f32 %v1010, %v1226
        %v1228 = vpop.f32.mrb[0].mxu0
        %1229 = vmatprep.mubr.f32.mxu0 0.0
        %v1230 = vand.u32 %v848, 4294901760
        %1231 = vmatmul.mubr.f32.gmra.mrb[0].mxu0 %v1230
        %v1232 = vpop.f32.mrb[0].mxu0
        %v1233 = vadd.f32 %v1020, %v1232
        %v1234 = vpop.f32.mrb[0].mxu0
        %1235 = vmatprep.mubr.f32.mxu0 0.0
        %v1236 = vand.u32 %v851, 4294901760
        %1237 = vmatmul.mubr.f32.gmra.mrb[0].mxu0 %v1236
        %v1238 = vpop.f32.mrb[0].mxu0
        %v1239 = vadd.f32 %v1030, %v1238
        %v1240 = vpop.f32.mrb[0].mxu0
        %1241 = vmatprep.mubr.f32.mxu0 0.0
        %v1242 = vand.u32 %v854, 4294901760
        %1243 = vmatmul.mubr.f32.gmra.mrb[0].mxu0 %v1242
        %v1244 = vpop.f32.mrb[0].mxu0
        %v1245 = vadd.f32 %v1040, %v1244
        %v1246 = vpop.f32.mrb[0].mxu0
        %1247 = vmatprep.mubr.f32.mxu0 0.0
        %v1248 = vand.u32 %v857, 4294901760
        %1249 = vmatmul.mubr.f32.gmra.mrb[0].mxu0 %v1248
        %v1250 = vpop.f32.mrb[0].mxu0
        %v1251 = vadd.f32 %v1050, %v1250
        %v1252 = vpop.f32.mrb[0].mxu0
        %1253 = vmatprep.mubr.f32.mxu0 0.0
        %v1254 = vand.u32 %v860, 4294901760
        %1255 = vmatmul.mubr.f32.gmra.mrb[0].mxu0 %v1254
        %v1256 = vpop.f32.mrb[0].mxu0
        %v1257 = vadd.f32 %v1060, %v1256
        %v1258 = vpop.f32.mrb[0].mxu0
        %1259 = vmatprep.mubr.f32.mxu0 0.0
        %v1260 = vand.u32 %v863, 4294901760
        %1261 = vmatmul.mubr.f32.gmra.mrb[0].mxu0 %v1260
        %v1262 = vpop.f32.mrb[0].mxu0
        %v1263 = vadd.f32 %v1070, %v1262
        %v1264 = vpop.f32.mrb[0].mxu0
        %1265 = vmatprep.mubr.f32.mxu0 0.0
        %v1266 = vand.u32 %v866, 4294901760
        %1267 = vmatmul.mubr.f32.gmra.mrb[0].mxu0 %v1266
        %v1268 = vpop.f32.mrb[0].mxu0
        %v1269 = vadd.f32 %v1080, %v1268
        %v1270 = vpop.f32.mrb[0].mxu0
        %1271 = vmatprep.mubr.f32.mxu0 0.0
        %v1272 = vand.u32 %v869, 4294901760
        %1273 = vmatmul.mubr.f32.gmra.mrb[0].mxu0 %v1272
        %v1274 = vpop.f32.mrb[0].mxu0
        %v1275 = vadd.f32 %v1090, %v1274
        %v1276 = vpop.f32.mrb[0].mxu0
        %1277 = vmatprep.mubr.f32.mxu0 0.0
        %v1278 = vand.u32 %v872, 4294901760
        %1279 = vmatmul.mubr.f32.gmra.mrb[0].mxu0 %v1278
        %v1280 = vpop.f32.mrb[0].mxu0
        %v1281 = vadd.f32 %v1100, %v1280
        %v1282 = vpop.f32.mrb[0].mxu0
        %1283 = vdwg.mxu0
        %1284 = vmatprep.subr.mxu0 0.0
        %v1285 = vand.u32 %v822, 4294901760
        %v1286 = vsub.f32 %v822, %v1285
        %1287 = vmatpush1.msra.mxu0 %v1286
        %1288 = vmatprep.subr.mxu0 0.0
        %v1289 = vand.u32 %v823, 4294901760
        %v1290 = vsub.f32 %v823, %v1289
        %1291 = vmatpush1.msra.mxu0 %v1290
        %1292 = vmatprep.subr.mxu0 0.0
        %v1293 = vand.u32 %v824, 4294901760
        %v1294 = vsub.f32 %v824, %v1293
        %1295 = vmatpush1.msra.mxu0 %v1294
        %1296 = vmatprep.subr.mxu0 0.0
        %v1297 = vand.u32 %v825, 4294901760
        %v1298 = vsub.f32 %v825, %v1297
        %1299 = vmatpush1.msra.mxu0 %v1298
        %1300 = vmatprep.subr.mxu0 0.0
        %1301 = vmatpush1.msra.mxu0 0.0
        %1302 = vmatprep.subr.mxu0 0.0
        %1303 = vmatpush1.msra.mxu0 0.0
        %1304 = vmatprep.subr.mxu0 0.0
        %1305 = vmatpush1.msra.mxu0 0.0
        %1306 = vmatprep.subr.mxu0 0.0
        %1307 = vmatpush1.msra.mxu0 0.0
        %1308 = vmatprep.subr.mxu0 0.0
        %1309 = vmatpush1.msra.mxu0 0.0
        %1310 = vmatprep.subr.mxu0 0.0
        %1311 = vmatpush1.msra.mxu0 0.0
        %1312 = vmatprep.subr.mxu0 0.0
        %1313 = vmatpush1.msra.mxu0 0.0
        %1314 = vmatprep.subr.mxu0 0.0
        %1315 = vmatpush1.msra.mxu0 0.0
        %1316 = vmatprep.subr.mxu0 0.0
        %1317 = vmatpush1.msra.mxu0 0.0
        %1318 = vmatprep.subr.mxu0 0.0
        %1319 = vmatpush1.msra.mxu0 0.0
        %1320 = vmatprep.subr.mxu0 0.0
        %1321 = vmatpush1.msra.mxu0 0.0
        %1322 = vmatprep.subr.mxu0 0.0
        %1323 = vmatpush1.msra.mxu0 0.0
        %1324 = vmatprep.subr.mxu0 0.0
        %1325 = vmatpush1.msra.mxu0 0.0
        %1326 = vmatprep.subr.mxu0 0.0
        %1327 = vmatpush1.msra.mxu0 0.0
        %1328 = vmatprep.subr.mxu0 0.0
        %1329 = vmatpush1.msra.mxu0 0.0
        %1330 = vmatprep.subr.mxu0 0.0
        %1331 = vmatpush1.msra.mxu0 0.0
        %1332 = vmatprep.subr.mxu0 0.0
        %1333 = vmatpush1.msra.mxu0 0.0
        %1334 = vmatprep.subr.mxu0 0.0
        %1335 = vmatpush1.msra.mxu0 0.0
        %1336 = vmatprep.subr.mxu0 0.0
        %1337 = vmatpush1.msra.mxu0 0.0
        %1338 = vmatprep.subr.mxu0 0.0
        %1339 = vmatpush1.msra.mxu0 0.0
        %1340 = vmatprep.subr.mxu0 0.0
        %1341 = vmatpush1.msra.mxu0 0.0
        %1342 = vmatprep.subr.mxu0 0.0
        %1343 = vmatpush1.msra.mxu0 0.0
        %1344 = vmatprep.subr.mxu0 0.0
        %1345 = vmatpush1.msra.mxu0 0.0
        %1346 = vmatprep.subr.mxu0 0.0
        %1347 = vmatpush1.msra.mxu0 0.0
        %1348 = vmatprep.subr.mxu0 0.0
        %1349 = vmatpush1.msra.mxu0 0.0
        %1350 = vmatprep.subr.mxu0 0.0
        %1351 = vmatpush1.msra.mxu0 0.0
        %1352 = vmatprep.subr.mxu0 0.0
        %1353 = vmatpush1.msra.mxu0 0.0
        %1354 = vmatprep.subr.mxu0 0.0
        %1355 = vmatpush1.msra.mxu0 0.0
        %1356 = vmatprep.mubr.f32.mxu0 0.0
        %v1357 = vand.u32 %v827, 4294901760
        %v1358 = vsub.f32 %v827, %v1357
        %1359 = vmatmul.mubr.f32.gmra.mrb[0].mxu0 %v1358
        %v1360 = vpop.f32.mrb[0].mxu0
        %v1361 = vadd.f32 %v1191, %v1360
        %v1362 = vpop.f32.mrb[0].mxu0
        %1363 = vmatprep.mubr.f32.mxu0 0.0
        %v1364 = vand.u32 %v830, 4294901760
        %v1365 = vsub.f32 %v830, %v1364
        %1366 = vmatmul.mubr.f32.gmra.mrb[0].mxu0 %v1365
        %v1367 = vpop.f32.mrb[0].mxu0
        %v1368 = vadd.f32 %v1197, %v1367
        %v1369 = vpop.f32.mrb[0].mxu0
        %1370 = vmatprep.mubr.f32.mxu0 0.0
        %v1371 = vand.u32 %v833, 4294901760
        %v1372 = vsub.f32 %v833, %v1371
        %1373 = vmatmul.mubr.f32.gmra.mrb[0].mxu0 %v1372
        %v1374 = vpop.f32.mrb[0].mxu0
        %v1375 = vadd.f32 %v1203, %v1374
        %v1376 = vpop.f32.mrb[0].mxu0
        %1377 = vmatprep.mubr.f32.mxu0 0.0
        %v1378 = vand.u32 %v836, 4294901760
        %v1379 = vsub.f32 %v836, %v1378
        %1380 = vmatmul.mubr.f32.gmra.mrb[0].mxu0 %v1379
        %v1381 = vpop.f32.mrb[0].mxu0
        %v1382 = vadd.f32 %v1209, %v1381
        %v1383 = vpop.f32.mrb[0].mxu0
        %1384 = vmatprep.mubr.f32.mxu0 0.0
        %v1385 = vand.u32 %v839, 4294901760
        %v1386 = vsub.f32 %v839, %v1385
        %1387 = vmatmul.mubr.f32.gmra.mrb[0].mxu0 %v1386
        %v1388 = vpop.f32.mrb[0].mxu0
        %v1389 = vadd.f32 %v1215, %v1388
        %v1390 = vpop.f32.mrb[0].mxu0
        %1391 = vmatprep.mubr.f32.mxu0 0.0
        %v1392 = vand.u32 %v842, 4294901760
        %v1393 = vsub.f32 %v842, %v1392
        %1394 = vmatmul.mubr.f32.gmra.mrb[0].mxu0 %v1393
        %v1395 = vpop.f32.mrb[0].mxu0
        %v1396 = vadd.f32 %v1221, %v1395
        %v1397 = vpop.f32.mrb[0].mxu0
        %1398 = vmatprep.mubr.f32.mxu0 0.0
        %v1399 = vand.u32 %v845, 4294901760
        %v1400 = vsub.f32 %v845, %v1399
        %1401 = vmatmul.mubr.f32.gmra.mrb[0].mxu0 %v1400
        %v1402 = vpop.f32.mrb[0].mxu0
        %v1403 = vadd.f32 %v1227, %v1402
        %v1404 = vpop.f32.mrb[0].mxu0
        %1405 = vmatprep.mubr.f32.mxu0 0.0
        %v1406 = vand.u32 %v848, 4294901760
        %v1407 = vsub.f32 %v848, %v1406
        %1408 = vmatmul.mubr.f32.gmra.mrb[0].mxu0 %v1407
        %v1409 = vpop.f32.mrb[0].mxu0
        %v1410 = vadd.f32 %v1233, %v1409
        %v1411 = vpop.f32.mrb[0].mxu0
        %1412 = vmatprep.mubr.f32.mxu0 0.0
        %v1413 = vand.u32 %v851, 4294901760
        %v1414 = vsub.f32 %v851, %v1413
        %1415 = vmatmul.mubr.f32.gmra.mrb[0].mxu0 %v1414
        %v1416 = vpop.f32.mrb[0].mxu0
        %v1417 = vadd.f32 %v1239, %v1416
        %v1418 = vpop.f32.mrb[0].mxu0
        %1419 = vmatprep.mubr.f32.mxu0 0.0
        %v1420 = vand.u32 %v854, 4294901760
        %v1421 = vsub.f32 %v854, %v1420
        %1422 = vmatmul.mubr.f32.gmra.mrb[0].mxu0 %v1421
        %v1423 = vpop.f32.mrb[0].mxu0
        %v1424 = vadd.f32 %v1245, %v1423
        %v1425 = vpop.f32.mrb[0].mxu0
        %1426 = vmatprep.mubr.f32.mxu0 0.0
        %v1427 = vand.u32 %v857, 4294901760
        %v1428 = vsub.f32 %v857, %v1427
        %1429 = vmatmul.mubr.f32.gmra.mrb[0].mxu0 %v1428
        %v1430 = vpop.f32.mrb[0].mxu0
        %v1431 = vadd.f32 %v1251, %v1430
        %v1432 = vpop.f32.mrb[0].mxu0
        %1433 = vmatprep.mubr.f32.mxu0 0.0
        %v1434 = vand.u32 %v860, 4294901760
        %v1435 = vsub.f32 %v860, %v1434
        %1436 = vmatmul.mubr.f32.gmra.mrb[0].mxu0 %v1435
        %v1437 = vpop.f32.mrb[0].mxu0
        %v1438 = vadd.f32 %v1257, %v1437
        %v1439 = vpop.f32.mrb[0].mxu0
        %1440 = vmatprep.mubr.f32.mxu0 0.0
        %v1441 = vand.u32 %v863, 4294901760
        %v1442 = vsub.f32 %v863, %v1441
        %1443 = vmatmul.mubr.f32.gmra.mrb[0].mxu0 %v1442
        %v1444 = vpop.f32.mrb[0].mxu0
        %v1445 = vadd.f32 %v1263, %v1444
        %v1446 = vpop.f32.mrb[0].mxu0
        %1447 = vmatprep.mubr.f32.mxu0 0.0
        %v1448 = vand.u32 %v866, 4294901760
        %v1449 = vsub.f32 %v866, %v1448
        %1450 = vmatmul.mubr.f32.gmra.mrb[0].mxu0 %v1449
        %v1451 = vpop.f32.mrb[0].mxu0
        %v1452 = vadd.f32 %v1269, %v1451
        %v1453 = vpop.f32.mrb[0].mxu0
        %1454 = vmatprep.mubr.f32.mxu0 0.0
        %v1455 = vand.u32 %v869, 4294901760
        %v1456 = vsub.f32 %v869, %v1455
        %1457 = vmatmul.mubr.f32.gmra.mrb[0].mxu0 %v1456
        %v1458 = vpop.f32.mrb[0].mxu0
        %v1459 = vadd.f32 %v1275, %v1458
        %v1460 = vpop.f32.mrb[0].mxu0
        %1461 = vmatprep.mubr.f32.mxu0 0.0
        %v1462 = vand.u32 %v872, 4294901760
        %v1463 = vsub.f32 %v872, %v1462
        %1464 = vmatmul.mubr.f32.gmra.mrb[0].mxu0 %v1463
        %v1465 = vpop.f32.mrb[0].mxu0
        %v1466 = vadd.f32 %v1281, %v1465
        %v1467 = vpop.f32.mrb[0].mxu0
        %1468 = vdwg.mxu0
        %1469 = vmatprep.subr.mxu0 0.0
        %v1470 = vand.u32 %v822, 4294901760
        %1471 = vmatpush1.msra.mxu0 %v1470
        %1472 = vmatprep.subr.mxu0 0.0
        %v1473 = vand.u32 %v823, 4294901760
        %1474 = vmatpush1.msra.mxu0 %v1473
        %1475 = vmatprep.subr.mxu0 0.0
        %v1476 = vand.u32 %v824, 4294901760
        %1477 = vmatpush1.msra.mxu0 %v1476
        %1478 = vmatprep.subr.mxu0 0.0
        %v1479 = vand.u32 %v825, 4294901760
        %1480 = vmatpush1.msra.mxu0 %v1479
        %1481 = vmatprep.subr.mxu0 0.0
        %1482 = vmatpush1.msra.mxu0 0.0
        %1483 = vmatprep.subr.mxu0 0.0
        %1484 = vmatpush1.msra.mxu0 0.0
        %1485 = vmatprep.subr.mxu0 0.0
        %1486 = vmatpush1.msra.mxu0 0.0
        %1487 = vmatprep.subr.mxu0 0.0
        %1488 = vmatpush1.msra.mxu0 0.0
        %1489 = vmatprep.subr.mxu0 0.0
        %1490 = vmatpush1.msra.mxu0 0.0
        %1491 = vmatprep.subr.mxu0 0.0
        %1492 = vmatpush1.msra.mxu0 0.0
        %1493 = vmatprep.subr.mxu0 0.0
        %1494 = vmatpush1.msra.mxu0 0.0
        %1495 = vmatprep.subr.mxu0 0.0
        %1496 = vmatpush1.msra.mxu0 0.0
        %1497 = vmatprep.subr.mxu0 0.0
        %1498 = vmatpush1.msra.mxu0 0.0
        %1499 = vmatprep.subr.mxu0 0.0
        %1500 = vmatpush1.msra.mxu0 0.0
        %1501 = vmatprep.subr.mxu0 0.0
        %1502 = vmatpush1.msra.mxu0 0.0
        %1503 = vmatprep.subr.mxu0 0.0
        %1504 = vmatpush1.msra.mxu0 0.0
        %1505 = vmatprep.subr.mxu0 0.0
        %1506 = vmatpush1.msra.mxu0 0.0
        %1507 = vmatprep.subr.mxu0 0.0
        %1508 = vmatpush1.msra.mxu0 0.0
        %1509 = vmatprep.subr.mxu0 0.0
        %1510 = vmatpush1.msra.mxu0 0.0
        %1511 = vmatprep.subr.mxu0 0.0
        %1512 = vmatpush1.msra.mxu0 0.0
        %1513 = vmatprep.subr.mxu0 0.0
        %1514 = vmatpush1.msra.mxu0 0.0
        %1515 = vmatprep.subr.mxu0 0.0
        %1516 = vmatpush1.msra.mxu0 0.0
        %1517 = vmatprep.subr.mxu0 0.0
        %1518 = vmatpush1.msra.mxu0 0.0
        %1519 = vmatprep.subr.mxu0 0.0
        %1520 = vmatpush1.msra.mxu0 0.0
        %1521 = vmatprep.subr.mxu0 0.0
        %1522 = vmatpush1.msra.mxu0 0.0
        %1523 = vmatprep.subr.mxu0 0.0
        %1524 = vmatpush1.msra.mxu0 0.0
        %1525 = vmatprep.subr.mxu0 0.0
        %1526 = vmatpush1.msra.mxu0 0.0
        %1527 = vmatprep.subr.mxu0 0.0
        %1528 = vmatpush1.msra.mxu0 0.0
        %1529 = vmatprep.subr.mxu0 0.0
        %1530 = vmatpush1.msra.mxu0 0.0
        %1531 = vmatprep.subr.mxu0 0.0
        %1532 = vmatpush1.msra.mxu0 0.0
        %1533 = vmatprep.subr.mxu0 0.0
        %1534 = vmatpush1.msra.mxu0 0.0
        %1535 = vmatprep.subr.mxu0 0.0
        %1536 = vmatpush1.msra.mxu0 0.0
        %1537 = vmatprep.mubr.f32.mxu0 0.0
        %v1538 = vand.u32 %v827, 4294901760
        %v1539 = vsub.f32 %v827, %v1538
        %v1540 = vand.u32 %v1539, 4294901760
        %1541 = vmatmul.mubr.f32.gmra.mrb[0].mxu0 %v1540
        %v1542 = vpop.f32.mrb[0].mxu0
        %v1543 = vadd.f32 %v1361, %v1542
        %v1544 = vpop.f32.mrb[0].mxu0
        %1545 = vmatprep.mubr.f32.mxu0 0.0
        %v1546 = vand.u32 %v830, 4294901760
        %v1547 = vsub.f32 %v830, %v1546
        %v1548 = vand.u32 %v1547, 4294901760
        %1549 = vmatmul.mubr.f32.gmra.mrb[0].mxu0 %v1548
        %v1550 = vpop.f32.mrb[0].mxu0
        %v1551 = vadd.f32 %v1368, %v1550
        %v1552 = vpop.f32.mrb[0].mxu0
        %1553 = vmatprep.mubr.f32.mxu0 0.0
        %v1554 = vand.u32 %v833, 4294901760
        %v1555 = vsub.f32 %v833, %v1554
        %v1556 = vand.u32 %v1555, 4294901760
        %1557 = vmatmul.mubr.f32.gmra.mrb[0].mxu0 %v1556
        %v1558 = vpop.f32.mrb[0].mxu0
        %v1559 = vadd.f32 %v1375, %v1558
        %v1560 = vpop.f32.mrb[0].mxu0
        %1561 = vmatprep.mubr.f32.mxu0 0.0
        %v1562 = vand.u32 %v836, 4294901760
        %v1563 = vsub.f32 %v836, %v1562
        %v1564 = vand.u32 %v1563, 4294901760
        %1565 = vmatmul.mubr.f32.gmra.mrb[0].mxu0 %v1564
        %v1566 = vpop.f32.mrb[0].mxu0
        %v1567 = vadd.f32 %v1382, %v1566
        %v1568 = vpop.f32.mrb[0].mxu0
        %1569 = vmatprep.mubr.f32.mxu0 0.0
        %v1570 = vand.u32 %v839, 4294901760
        %v1571 = vsub.f32 %v839, %v1570
        %v1572 = vand.u32 %v1571, 4294901760
        %1573 = vmatmul.mubr.f32.gmra.mrb[0].mxu0 %v1572
        %v1574 = vpop.f32.mrb[0].mxu0
        %v1575 = vadd.f32 %v1389, %v1574
        %v1576 = vpop.f32.mrb[0].mxu0
        %1577 = vmatprep.mubr.f32.mxu0 0.0
        %v1578 = vand.u32 %v842, 4294901760
        %v1579 = vsub.f32 %v842, %v1578
        %v1580 = vand.u32 %v1579, 4294901760
        %1581 = vmatmul.mubr.f32.gmra.mrb[0].mxu0 %v1580
        %v1582 = vpop.f32.mrb[0].mxu0
        %v1583 = vadd.f32 %v1396, %v1582
        %v1584 = vpop.f32.mrb[0].mxu0
        %1585 = vmatprep.mubr.f32.mxu0 0.0
        %v1586 = vand.u32 %v845, 4294901760
        %v1587 = vsub.f32 %v845, %v1586
        %v1588 = vand.u32 %v1587, 4294901760
        %1589 = vmatmul.mubr.f32.gmra.mrb[0].mxu0 %v1588
        %v1590 = vpop.f32.mrb[0].mxu0
        %v1591 = vadd.f32 %v1403, %v1590
        %v1592 = vpop.f32.mrb[0].mxu0
        %1593 = vmatprep.mubr.f32.mxu0 0.0
        %v1594 = vand.u32 %v848, 4294901760
        %v1595 = vsub.f32 %v848, %v1594
        %v1596 = vand.u32 %v1595, 4294901760
        %1597 = vmatmul.mubr.f32.gmra.mrb[0].mxu0 %v1596
        %v1598 = vpop.f32.mrb[0].mxu0
        %v1599 = vadd.f32 %v1410, %v1598
        %v1600 = vpop.f32.mrb[0].mxu0
        %1601 = vmatprep.mubr.f32.mxu0 0.0
        %v1602 = vand.u32 %v851, 4294901760
        %v1603 = vsub.f32 %v851, %v1602
        %v1604 = vand.u32 %v1603, 4294901760
        %1605 = vmatmul.mubr.f32.gmra.mrb[0].mxu0 %v1604
        %v1606 = vpop.f32.mrb[0].mxu0
        %v1607 = vadd.f32 %v1417, %v1606
        %v1608 = vpop.f32.mrb[0].mxu0
        %1609 = vmatprep.mubr.f32.mxu0 0.0
        %v1610 = vand.u32 %v854, 4294901760
        %v1611 = vsub.f32 %v854, %v1610
        %v1612 = vand.u32 %v1611, 4294901760
        %1613 = vmatmul.mubr.f32.gmra.mrb[0].mxu0 %v1612
        %v1614 = vpop.f32.mrb[0].mxu0
        %v1615 = vadd.f32 %v1424, %v1614
        %v1616 = vpop.f32.mrb[0].mxu0
        %1617 = vmatprep.mubr.f32.mxu0 0.0
        %v1618 = vand.u32 %v857, 4294901760
        %v1619 = vsub.f32 %v857, %v1618
        %v1620 = vand.u32 %v1619, 4294901760
        %1621 = vmatmul.mubr.f32.gmra.mrb[0].mxu0 %v1620
        %v1622 = vpop.f32.mrb[0].mxu0
        %v1623 = vadd.f32 %v1431, %v1622
        %v1624 = vpop.f32.mrb[0].mxu0
        %1625 = vmatprep.mubr.f32.mxu0 0.0
        %v1626 = vand.u32 %v860, 4294901760
        %v1627 = vsub.f32 %v860, %v1626
        %v1628 = vand.u32 %v1627, 4294901760
        %1629 = vmatmul.mubr.f32.gmra.mrb[0].mxu0 %v1628
        %v1630 = vpop.f32.mrb[0].mxu0
        %v1631 = vadd.f32 %v1438, %v1630
        %v1632 = vpop.f32.mrb[0].mxu0
        %1633 = vmatprep.mubr.f32.mxu0 0.0
        %v1634 = vand.u32 %v863, 4294901760
        %v1635 = vsub.f32 %v863, %v1634
        %v1636 = vand.u32 %v1635, 4294901760
        %1637 = vmatmul.mubr.f32.gmra.mrb[0].mxu0 %v1636
        %v1638 = vpop.f32.mrb[0].mxu0
        %v1639 = vadd.f32 %v1445, %v1638
        %v1640 = vpop.f32.mrb[0].mxu0
        %1641 = vmatprep.mubr.f32.mxu0 0.0
        %v1642 = vand.u32 %v866, 4294901760
        %v1643 = vsub.f32 %v866, %v1642
        %v1644 = vand.u32 %v1643, 4294901760
        %1645 = vmatmul.mubr.f32.gmra.mrb[0].mxu0 %v1644
        %v1646 = vpop.f32.mrb[0].mxu0
        %v1647 = vadd.f32 %v1452, %v1646
        %v1648 = vpop.f32.mrb[0].mxu0
        %1649 = vmatprep.mubr.f32.mxu0 0.0
        %v1650 = vand.u32 %v869, 4294901760
        %v1651 = vsub.f32 %v869, %v1650
        %v1652 = vand.u32 %v1651, 4294901760
        %1653 = vmatmul.mubr.f32.gmra.mrb[0].mxu0 %v1652
        %v1654 = vpop.f32.mrb[0].mxu0
        %v1655 = vadd.f32 %v1459, %v1654
        %v1656 = vpop.f32.mrb[0].mxu0
        %1657 = vmatprep.mubr.f32.mxu0 0.0
        %v1658 = vand.u32 %v872, 4294901760
        %v1659 = vsub.f32 %v872, %v1658
        %v1660 = vand.u32 %v1659, 4294901760
        %1661 = vmatmul.mubr.f32.gmra.mrb[0].mxu0 %v1660
        %v1662 = vpop.f32.mrb[0].mxu0
        %v1663 = vadd.f32 %v1466, %v1662
        %v1664 = vpop.f32.mrb[0].mxu0
        %1665 = vdwg.mxu0
        %1666 = vmatprep.subr.mxu0 0.0
        %v1667 = vand.u32 %v822, 4294901760
        %v1668 = vsub.f32 %v822, %v1667
        %v1669 = vand.u32 %v1668, 4294901760
        %1670 = vmatpush1.msra.mxu0 %v1669
        %1671 = vmatprep.subr.mxu0 0.0
        %v1672 = vand.u32 %v823, 4294901760
        %v1673 = vsub.f32 %v823, %v1672
        %v1674 = vand.u32 %v1673, 4294901760
        %1675 = vmatpush1.msra.mxu0 %v1674
        %1676 = vmatprep.subr.mxu0 0.0
        %v1677 = vand.u32 %v824, 4294901760
        %v1678 = vsub.f32 %v824, %v1677
        %v1679 = vand.u32 %v1678, 4294901760
        %1680 = vmatpush1.msra.mxu0 %v1679
        %1681 = vmatprep.subr.mxu0 0.0
        %v1682 = vand.u32 %v825, 4294901760
        %v1683 = vsub.f32 %v825, %v1682
        %v1684 = vand.u32 %v1683, 4294901760
        %1685 = vmatpush1.msra.mxu0 %v1684
        %1686 = vmatprep.subr.mxu0 0.0
        %1687 = vmatpush1.msra.mxu0 0.0
        %1688 = vmatprep.subr.mxu0 0.0
        %1689 = vmatpush1.msra.mxu0 0.0
        %1690 = vmatprep.subr.mxu0 0.0
        %1691 = vmatpush1.msra.mxu0 0.0
        %1692 = vmatprep.subr.mxu0 0.0
        %1693 = vmatpush1.msra.mxu0 0.0
        %1694 = vmatprep.subr.mxu0 0.0
        %1695 = vmatpush1.msra.mxu0 0.0
        %1696 = vmatprep.subr.mxu0 0.0
        %1697 = vmatpush1.msra.mxu0 0.0
        %1698 = vmatprep.subr.mxu0 0.0
        %1699 = vmatpush1.msra.mxu0 0.0
        %1700 = vmatprep.subr.mxu0 0.0
        %1701 = vmatpush1.msra.mxu0 0.0
        %1702 = vmatprep.subr.mxu0 0.0
        %1703 = vmatpush1.msra.mxu0 0.0
        %1704 = vmatprep.subr.mxu0 0.0
        %1705 = vmatpush1.msra.mxu0 0.0
        %1706 = vmatprep.subr.mxu0 0.0
        %1707 = vmatpush1.msra.mxu0 0.0
        %1708 = vmatprep.subr.mxu0 0.0
        %1709 = vmatpush1.msra.mxu0 0.0
        %1710 = vmatprep.subr.mxu0 0.0
        %1711 = vmatpush1.msra.mxu0 0.0
        %1712 = vmatprep.subr.mxu0 0.0
        %1713 = vmatpush1.msra.mxu0 0.0
        %1714 = vmatprep.subr.mxu0 0.0
        %1715 = vmatpush1.msra.mxu0 0.0
        %1716 = vmatprep.subr.mxu0 0.0
        %1717 = vmatpush1.msra.mxu0 0.0
        %1718 = vmatprep.subr.mxu0 0.0
        %1719 = vmatpush1.msra.mxu0 0.0
        %1720 = vmatprep.subr.mxu0 0.0
        %1721 = vmatpush1.msra.mxu0 0.0
        %1722 = vmatprep.subr.mxu0 0.0
        %1723 = vmatpush1.msra.mxu0 0.0
        %1724 = vmatprep.subr.mxu0 0.0
        %1725 = vmatpush1.msra.mxu0 0.0
        %1726 = vmatprep.subr.mxu0 0.0
        %1727 = vmatpush1.msra.mxu0 0.0
        %1728 = vmatprep.subr.mxu0 0.0
        %1729 = vmatpush1.msra.mxu0 0.0
        %1730 = vmatprep.subr.mxu0 0.0
        %1731 = vmatpush1.msra.mxu0 0.0
        %1732 = vmatprep.subr.mxu0 0.0
        %1733 = vmatpush1.msra.mxu0 0.0
        %1734 = vmatprep.subr.mxu0 0.0
        %1735 = vmatpush1.msra.mxu0 0.0
        %1736 = vmatprep.subr.mxu0 0.0
        %1737 = vmatpush1.msra.mxu0 0.0
        %1738 = vmatprep.subr.mxu0 0.0
        %1739 = vmatpush1.msra.mxu0 0.0
        %1740 = vmatprep.subr.mxu0 0.0
        %1741 = vmatpush1.msra.mxu0 0.0
        %1742 = vmatprep.mubr.f32.mxu0 0.0
        %v1743 = vand.u32 %v827, 4294901760
        %1744 = vmatmul.mubr.f32.gmra.mrb[0].mxu0 %v1743
        %v1745 = vpop.f32.mrb[0].mxu0
        %v1746 = vadd.f32 %v1543, %v1745
        %v1747 = vpop.f32.mrb[0].mxu0
        %1748 = vmatprep.mubr.f32.mxu0 0.0
        %v1749 = vand.u32 %v830, 4294901760
        %1750 = vmatmul.mubr.f32.gmra.mrb[0].mxu0 %v1749
        %v1751 = vpop.f32.mrb[0].mxu0
        %v1752 = vadd.f32 %v1551, %v1751
        %v1753 = vpop.f32.mrb[0].mxu0
        %1754 = vmatprep.mubr.f32.mxu0 0.0
        %v1755 = vand.u32 %v833, 4294901760
        %1756 = vmatmul.mubr.f32.gmra.mrb[0].mxu0 %v1755
        %v1757 = vpop.f32.mrb[0].mxu0
        %v1758 = vadd.f32 %v1559, %v1757
        %v1759 = vpop.f32.mrb[0].mxu0
        %1760 = vmatprep.mubr.f32.mxu0 0.0
        %v1761 = vand.u32 %v836, 4294901760
        %1762 = vmatmul.mubr.f32.gmra.mrb[0].mxu0 %v1761
        %v1763 = vpop.f32.mrb[0].mxu0
        %v1764 = vadd.f32 %v1567, %v1763
        %v1765 = vpop.f32.mrb[0].mxu0
        %1766 = vmatprep.mubr.f32.mxu0 0.0
        %v1767 = vand.u32 %v839, 4294901760
        %1768 = vmatmul.mubr.f32.gmra.mrb[0].mxu0 %v1767
        %v1769 = vpop.f32.mrb[0].mxu0
        %v1770 = vadd.f32 %v1575, %v1769
        %v1771 = vpop.f32.mrb[0].mxu0
        %1772 = vmatprep.mubr.f32.mxu0 0.0
        %v1773 = vand.u32 %v842, 4294901760
        %1774 = vmatmul.mubr.f32.gmra.mrb[0].mxu0 %v1773
        %v1775 = vpop.f32.mrb[0].mxu0
        %v1776 = vadd.f32 %v1583, %v1775
        %v1777 = vpop.f32.mrb[0].mxu0
        %1778 = vmatprep.mubr.f32.mxu0 0.0
        %v1779 = vand.u32 %v845, 4294901760
        %1780 = vmatmul.mubr.f32.gmra.mrb[0].mxu0 %v1779
        %v1781 = vpop.f32.mrb[0].mxu0
        %v1782 = vadd.f32 %v1591, %v1781
        %v1783 = vpop.f32.mrb[0].mxu0
        %1784 = vmatprep.mubr.f32.mxu0 0.0
        %v1785 = vand.u32 %v848, 4294901760
        %1786 = vmatmul.mubr.f32.gmra.mrb[0].mxu0 %v1785
        %v1787 = vpop.f32.mrb[0].mxu0
        %v1788 = vadd.f32 %v1599, %v1787
        %v1789 = vpop.f32.mrb[0].mxu0
        %1790 = vmatprep.mubr.f32.mxu0 0.0
        %v1791 = vand.u32 %v851, 4294901760
        %1792 = vmatmul.mubr.f32.gmra.mrb[0].mxu0 %v1791
        %v1793 = vpop.f32.mrb[0].mxu0
        %v1794 = vadd.f32 %v1607, %v1793
        %v1795 = vpop.f32.mrb[0].mxu0
        %1796 = vmatprep.mubr.f32.mxu0 0.0
        %v1797 = vand.u32 %v854, 4294901760
        %1798 = vmatmul.mubr.f32.gmra.mrb[0].mxu0 %v1797
        %v1799 = vpop.f32.mrb[0].mxu0
        %v1800 = vadd.f32 %v1615, %v1799
        %v1801 = vpop.f32.mrb[0].mxu0
        %1802 = vmatprep.mubr.f32.mxu0 0.0
        %v1803 = vand.u32 %v857, 4294901760
        %1804 = vmatmul.mubr.f32.gmra.mrb[0].mxu0 %v1803
        %v1805 = vpop.f32.mrb[0].mxu0
        %v1806 = vadd.f32 %v1623, %v1805
        %v1807 = vpop.f32.mrb[0].mxu0
        %1808 = vmatprep.mubr.f32.mxu0 0.0
        %v1809 = vand.u32 %v860, 4294901760
        %1810 = vmatmul.mubr.f32.gmra.mrb[0].mxu0 %v1809
        %v1811 = vpop.f32.mrb[0].mxu0
        %v1812 = vadd.f32 %v1631, %v1811
        %v1813 = vpop.f32.mrb[0].mxu0
        %1814 = vmatprep.mubr.f32.mxu0 0.0
        %v1815 = vand.u32 %v863, 4294901760
        %1816 = vmatmul.mubr.f32.gmra.mrb[0].mxu0 %v1815
        %v1817 = vpop.f32.mrb[0].mxu0
        %v1818 = vadd.f32 %v1639, %v1817
        %v1819 = vpop.f32.mrb[0].mxu0
        %1820 = vmatprep.mubr.f32.mxu0 0.0
        %v1821 = vand.u32 %v866, 4294901760
        %1822 = vmatmul.mubr.f32.gmra.mrb[0].mxu0 %v1821
        %v1823 = vpop.f32.mrb[0].mxu0
        %v1824 = vadd.f32 %v1647, %v1823
        %v1825 = vpop.f32.mrb[0].mxu0
        %1826 = vmatprep.mubr.f32.mxu0 0.0
        %v1827 = vand.u32 %v869, 4294901760
        %1828 = vmatmul.mubr.f32.gmra.mrb[0].mxu0 %v1827
        %v1829 = vpop.f32.mrb[0].mxu0
        %v1830 = vadd.f32 %v1655, %v1829
        %v1831 = vpop.f32.mrb[0].mxu0
        %1832 = vmatprep.mubr.f32.mxu0 0.0
        %v1833 = vand.u32 %v872, 4294901760
        %1834 = vmatmul.mubr.f32.gmra.mrb[0].mxu0 %v1833
        %v1835 = vpop.f32.mrb[0].mxu0
        %v1836 = vadd.f32 %v1663, %v1835
        %v1837 = vpop.f32.mrb[0].mxu0
        %1838 = vdwg.mxu0
        %1839 = vmatprep.subr.mxu0 0.0
        %v1840 = vand.u32 %v822, 4294901760
        %1841 = vmatpush1.msra.mxu0 %v1840
        %1842 = vmatprep.subr.mxu0 0.0
        %v1843 = vand.u32 %v823, 4294901760
        %1844 = vmatpush1.msra.mxu0 %v1843
        %1845 = vmatprep.subr.mxu0 0.0
        %v1846 = vand.u32 %v824, 4294901760
        %1847 = vmatpush1.msra.mxu0 %v1846
        %1848 = vmatprep.subr.mxu0 0.0
        %v1849 = vand.u32 %v825, 4294901760
        %1850 = vmatpush1.msra.mxu0 %v1849
        %1851 = vmatprep.subr.mxu0 0.0
        %1852 = vmatpush1.msra.mxu0 0.0
        %1853 = vmatprep.subr.mxu0 0.0
        %1854 = vmatpush1.msra.mxu0 0.0
        %1855 = vmatprep.subr.mxu0 0.0
        %1856 = vmatpush1.msra.mxu0 0.0
        %1857 = vmatprep.subr.mxu0 0.0
        %1858 = vmatpush1.msra.mxu0 0.0
        %1859 = vmatprep.subr.mxu0 0.0
        %1860 = vmatpush1.msra.mxu0 0.0
        %1861 = vmatprep.subr.mxu0 0.0
        %1862 = vmatpush1.msra.mxu0 0.0
        %1863 = vmatprep.subr.mxu0 0.0
        %1864 = vmatpush1.msra.mxu0 0.0
        %1865 = vmatprep.subr.mxu0 0.0
        %1866 = vmatpush1.msra.mxu0 0.0
        %1867 = vmatprep.subr.mxu0 0.0
        %1868 = vmatpush1.msra.mxu0 0.0
        %1869 = vmatprep.subr.mxu0 0.0
        %1870 = vmatpush1.msra.mxu0 0.0
        %1871 = vmatprep.subr.mxu0 0.0
        %1872 = vmatpush1.msra.mxu0 0.0
        %1873 = vmatprep.subr.mxu0 0.0
        %1874 = vmatpush1.msra.mxu0 0.0
        %1875 = vmatprep.subr.mxu0 0.0
        %1876 = vmatpush1.msra.mxu0 0.0
        %1877 = vmatprep.subr.mxu0 0.0
        %1878 = vmatpush1.msra.mxu0 0.0
        %1879 = vmatprep.subr.mxu0 0.0
        %1880 = vmatpush1.msra.mxu0 0.0
        %1881 = vmatprep.subr.mxu0 0.0
        %1882 = vmatpush1.msra.mxu0 0.0
        %1883 = vmatprep.subr.mxu0 0.0
        %1884 = vmatpush1.msra.mxu0 0.0
        %1885 = vmatprep.subr.mxu0 0.0
        %1886 = vmatpush1.msra.mxu0 0.0
        %1887 = vmatprep.subr.mxu0 0.0
        %1888 = vmatpush1.msra.mxu0 0.0
        %1889 = vmatprep.subr.mxu0 0.0
        %1890 = vmatpush1.msra.mxu0 0.0
        %1891 = vmatprep.subr.mxu0 0.0
        %1892 = vmatpush1.msra.mxu0 0.0
        %1893 = vmatprep.subr.mxu0 0.0
        %1894 = vmatpush1.msra.mxu0 0.0
        %1895 = vmatprep.subr.mxu0 0.0
        %1896 = vmatpush1.msra.mxu0 0.0
        %1897 = vmatprep.subr.mxu0 0.0
        %1898 = vmatpush1.msra.mxu0 0.0
        %1899 = vmatprep.subr.mxu0 0.0
        %1900 = vmatpush1.msra.mxu0 0.0
        %1901 = vmatprep.subr.mxu0 0.0
        %1902 = vmatpush1.msra.mxu0 0.0
        %1903 = vmatprep.subr.mxu0 0.0
        %1904 = vmatpush1.msra.mxu0 0.0
        %1905 = vmatprep.subr.mxu0 0.0
        %1906 = vmatpush1.msra.mxu0 0.0
        %1907 = vmatprep.mubr.f32.mxu0 0.0
        %v1908 = vand.u32 %v827, 4294901760
        %1909 = vmatmul.mubr.f32.gmra.mrb[0].mxu0 %v1908
        %v1910 = vpop.f32.mrb[0].mxu0
        %v1911 = vadd.f32 %v1746, %v1910
        %v1912 = vpop.f32.mrb[0].mxu0
        %1913 = vmatprep.mubr.f32.mxu0 0.0
        %v1914 = vand.u32 %v830, 4294901760
        %1915 = vmatmul.mubr.f32.gmra.mrb[0].mxu0 %v1914
        %v1916 = vpop.f32.mrb[0].mxu0
        %v1917 = vadd.f32 %v1752, %v1916
        %v1918 = vpop.f32.mrb[0].mxu0
        %1919 = vmatprep.mubr.f32.mxu0 0.0
        %v1920 = vand.u32 %v833, 4294901760
        %1921 = vmatmul.mubr.f32.gmra.mrb[0].mxu0 %v1920
        %v1922 = vpop.f32.mrb[0].mxu0
        %v1923 = vadd.f32 %v1758, %v1922
        %v1924 = vpop.f32.mrb[0].mxu0
        %1925 = vmatprep.mubr.f32.mxu0 0.0
        %v1926 = vand.u32 %v836, 4294901760
        %1927 = vmatmul.mubr.f32.gmra.mrb[0].mxu0 %v1926
        %v1928 = vpop.f32.mrb[0].mxu0
        %v1929 = vadd.f32 %v1764, %v1928
        %v1930 = vpop.f32.mrb[0].mxu0
        %1931 = vmatprep.mubr.f32.mxu0 0.0
        %v1932 = vand.u32 %v839, 4294901760
        %1933 = vmatmul.mubr.f32.gmra.mrb[0].mxu0 %v1932
        %v1934 = vpop.f32.mrb[0].mxu0
        %v1935 = vadd.f32 %v1770, %v1934
        %v1936 = vpop.f32.mrb[0].mxu0
        %1937 = vmatprep.mubr.f32.mxu0 0.0
        %v1938 = vand.u32 %v842, 4294901760
        %1939 = vmatmul.mubr.f32.gmra.mrb[0].mxu0 %v1938
        %v1940 = vpop.f32.mrb[0].mxu0
        %v1941 = vadd.f32 %v1776, %v1940
        %v1942 = vpop.f32.mrb[0].mxu0
        %1943 = vmatprep.mubr.f32.mxu0 0.0
        %v1944 = vand.u32 %v845, 4294901760
        %1945 = vmatmul.mubr.f32.gmra.mrb[0].mxu0 %v1944
        %v1946 = vpop.f32.mrb[0].mxu0
        %v1947 = vadd.f32 %v1782, %v1946
        %v1948 = vpop.f32.mrb[0].mxu0
        %1949 = vmatprep.mubr.f32.mxu0 0.0
        %v1950 = vand.u32 %v848, 4294901760
        %1951 = vmatmul.mubr.f32.gmra.mrb[0].mxu0 %v1950
        %v1952 = vpop.f32.mrb[0].mxu0
        %v1953 = vadd.f32 %v1788, %v1952
        %v1954 = vpop.f32.mrb[0].mxu0
        %1955 = vmatprep.mubr.f32.mxu0 0.0
        %v1956 = vand.u32 %v851, 4294901760
        %1957 = vmatmul.mubr.f32.gmra.mrb[0].mxu0 %v1956
        %v1958 = vpop.f32.mrb[0].mxu0
        %v1959 = vadd.f32 %v1794, %v1958
        %v1960 = vpop.f32.mrb[0].mxu0
        %1961 = vmatprep.mubr.f32.mxu0 0.0
        %v1962 = vand.u32 %v854, 4294901760
        %1963 = vmatmul.mubr.f32.gmra.mrb[0].mxu0 %v1962
        %v1964 = vpop.f32.mrb[0].mxu0
        %v1965 = vadd.f32 %v1800, %v1964
        %v1966 = vpop.f32.mrb[0].mxu0
        %1967 = vmatprep.mubr.f32.mxu0 0.0
        %v1968 = vand.u32 %v857, 4294901760
        %1969 = vmatmul.mubr.f32.gmra.mrb[0].mxu0 %v1968
        %v1970 = vpop.f32.mrb[0].mxu0
        %v1971 = vadd.f32 %v1806, %v1970
        %v1972 = vpop.f32.mrb[0].mxu0
        %1973 = vmatprep.mubr.f32.mxu0 0.0
        %v1974 = vand.u32 %v860, 4294901760
        %1975 = vmatmul.mubr.f32.gmra.mrb[0].mxu0 %v1974
        %v1976 = vpop.f32.mrb[0].mxu0
        %v1977 = vadd.f32 %v1812, %v1976
        %v1978 = vpop.f32.mrb[0].mxu0
        %1979 = vmatprep.mubr.f32.mxu0 0.0
        %v1980 = vand.u32 %v863, 4294901760
        %1981 = vmatmul.mubr.f32.gmra.mrb[0].mxu0 %v1980
        %v1982 = vpop.f32.mrb[0].mxu0
        %v1983 = vadd.f32 %v1818, %v1982
        %v1984 = vpop.f32.mrb[0].mxu0
        %1985 = vmatprep.mubr.f32.mxu0 0.0
        %v1986 = vand.u32 %v866, 4294901760
        %1987 = vmatmul.mubr.f32.gmra.mrb[0].mxu0 %v1986
        %v1988 = vpop.f32.mrb[0].mxu0
        %v1989 = vadd.f32 %v1824, %v1988
        %v1990 = vpop.f32.mrb[0].mxu0
        %1991 = vmatprep.mubr.f32.mxu0 0.0
        %v1992 = vand.u32 %v869, 4294901760
        %1993 = vmatmul.mubr.f32.gmra.mrb[0].mxu0 %v1992
        %v1994 = vpop.f32.mrb[0].mxu0
        %v1995 = vadd.f32 %v1830, %v1994
        %v1996 = vpop.f32.mrb[0].mxu0
        %1997 = vmatprep.mubr.f32.mxu0 0.0
        %v1998 = vand.u32 %v872, 4294901760
        %1999 = vmatmul.mubr.f32.gmra.mrb[0].mxu0 %v1998
        %v2000 = vpop.f32.mrb[0].mxu0
        %v2001 = vadd.f32 %v1836, %v2000
        %v2002 = vpop.f32.mrb[0].mxu0
        %2003 = vdwg.mxu0
        %v2004 = vmul.f32 %v1911, %v1911
        %v2005 = vmul.f32 %v1917, %v1917
        %v2006 = vmul.f32 %v1923, %v1923
        %v2007 = vmul.f32 %v1929, %v1929
        %v2008 = vmul.f32 %v1935, %v1935
        %v2009 = vmul.f32 %v1941, %v1941
        %v2010 = vmul.f32 %v1947, %v1947
        %v2011 = vmul.f32 %v1953, %v1953
        %v2012 = vmul.f32 %v1959, %v1959
        %v2013 = vmul.f32 %v1965, %v1965
        %v2014 = vmul.f32 %v1971, %v1971
        %v2015 = vmul.f32 %v1977, %v1977
        %v2016 = vmul.f32 %v1983, %v1983
        %v2017 = vmul.f32 %v1989, %v1989
        %v2018 = vmul.f32 %v1995, %v1995
        %v2019 = vmul.f32 %v2001, %v2001
        %v2020 = vmul.f32 %v1911, %v2004
        %v2021 = vmul.f32 %v1917, %v2005
        %v2022 = vmul.f32 %v1923, %v2006
        %v2023 = vmul.f32 %v1929, %v2007
        %v2024 = vmul.f32 %v1935, %v2008
        %v2025 = vmul.f32 %v1941, %v2009
        %v2026 = vmul.f32 %v1947, %v2010
        %v2027 = vmul.f32 %v1953, %v2011
        %v2028 = vmul.f32 %v1959, %v2012
        %v2029 = vmul.f32 %v1965, %v2013
        %v2030 = vmul.f32 %v1971, %v2014
        %v2031 = vmul.f32 %v1977, %v2015
        %v2032 = vmul.f32 %v1983, %v2016
        %v2033 = vmul.f32 %v1989, %v2017
        %v2034 = vmul.f32 %v1995, %v2018
        %v2035 = vmul.f32 %v2001, %v2019
        %v2036 = vmul.f32 %v2020, 0.044715
        %v2037 = vmul.f32 %v2021, 0.044715
        %v2038 = vmul.f32 %v2022, 0.044715
        %v2039 = vmul.f32 %v2023, 0.044715
        %v2040 = vmul.f32 %v2024, 0.044715
        %v2041 = vmul.f32 %v2025, 0.044715
        %v2042 = vmul.f32 %v2026, 0.044715
        %v2043 = vmul.f32 %v2027, 0.044715
        %v2044 = vmul.f32 %v2028, 0.044715
        %v2045 = vmul.f32 %v2029, 0.044715
        %v2046 = vmul.f32 %v2030, 0.044715
        %v2047 = vmul.f32 %v2031, 0.044715
        %v2048 = vmul.f32 %v2032, 0.044715
        %v2049 = vmul.f32 %v2033, 0.044715
        %v2050 = vmul.f32 %v2034, 0.044715
        %v2051 = vmul.f32 %v2035, 0.044715
        %v2052 = vadd.f32 %v1911, %v2036
        %v2053 = vadd.f32 %v1917, %v2037
        %v2054 = vadd.f32 %v1923, %v2038
        %v2055 = vadd.f32 %v1929, %v2039
        %v2056 = vadd.f32 %v1935, %v2040
        %v2057 = vadd.f32 %v1941, %v2041
        %v2058 = vadd.f32 %v1947, %v2042
        %v2059 = vadd.f32 %v1953, %v2043
        %v2060 = vadd.f32 %v1959, %v2044
        %v2061 = vadd.f32 %v1965, %v2045
        %v2062 = vadd.f32 %v1971, %v2046
        %v2063 = vadd.f32 %v1977, %v2047
        %v2064 = vadd.f32 %v1983, %v2048
        %v2065 = vadd.f32 %v1989, %v2049
        %v2066 = vadd.f32 %v1995, %v2050
        %v2067 = vadd.f32 %v2001, %v2051
        %v2068 = vmul.f32 %v2052, 0.7978846
        %v2069 = vmul.f32 %v2053, 0.7978846
        %v2070 = vmul.f32 %v2054, 0.7978846
        %v2071 = vmul.f32 %v2055, 0.7978846
        %v2072 = vmul.f32 %v2056, 0.7978846
        %v2073 = vmul.f32 %v2057, 0.7978846
        %v2074 = vmul.f32 %v2058, 0.7978846
        %v2075 = vmul.f32 %v2059, 0.7978846
        %v2076 = vmul.f32 %v2060, 0.7978846
        %v2077 = vmul.f32 %v2061, 0.7978846
        %v2078 = vmul.f32 %v2062, 0.7978846
        %v2079 = vmul.f32 %v2063, 0.7978846
        %v2080 = vmul.f32 %v2064, 0.7978846
        %v2081 = vmul.f32 %v2065, 0.7978846
        %v2082 = vmul.f32 %v2066, 0.7978846
        %v2083 = vmul.f32 %v2067, 0.7978846
        %v2084 = vtanh.pop %v2068
        %v2085 = vtanh.pop %v2069
        %v2086 = vtanh.pop %v2070
        %v2087 = vtanh.pop %v2071
        %v2088 = vtanh.pop %v2072
        %v2089 = vtanh.pop %v2073
        %v2090 = vtanh.pop %v2074
        %v2091 = vtanh.pop %v2075
        %v2092 = vtanh.pop %v2076
        %v2093 = vtanh.pop %v2077
        %v2094 = vtanh.pop %v2078
        %v2095 = vtanh.pop %v2079
        %v2096 = vtanh.pop %v2080
        %v2097 = vtanh.pop %v2081
        %v2098 = vtanh.pop %v2082
        %v2099 = vtanh.pop %v2083
        %v2100 = vadd.f32 %v2084, 1.0
        %v2101 = vadd.f32 %v2085, 1.0
        %v2102 = vadd.f32 %v2086, 1.0
        %v2103 = vadd.f32 %v2087, 1.0
        %v2104 = vadd.f32 %v2088, 1.0
        %v2105 = vadd.f32 %v2089, 1.0
        %v2106 = vadd.f32 %v2090, 1.0
        %v2107 = vadd.f32 %v2091, 1.0
        %v2108 = vadd.f32 %v2092, 1.0
        %v2109 = vadd.f32 %v2093, 1.0
        %v2110 = vadd.f32 %v2094, 1.0
        %v2111 = vadd.f32 %v2095, 1.0
        %v2112 = vadd.f32 %v2096, 1.0
        %v2113 = vadd.f32 %v2097, 1.0
        %v2114 = vadd.f32 %v2098, 1.0
        %v2115 = vadd.f32 %v2099, 1.0
        %v2116 = vmul.f32 %v2100, 0.5
        %v2117 = vmul.f32 %v2101, 0.5
        %v2118 = vmul.f32 %v2102, 0.5
        %v2119 = vmul.f32 %v2103, 0.5
        %v2120 = vmul.f32 %v2104, 0.5
        %v2121 = vmul.f32 %v2105, 0.5
        %v2122 = vmul.f32 %v2106, 0.5
        %v2123 = vmul.f32 %v2107, 0.5
        %v2124 = vmul.f32 %v2108, 0.5
        %v2125 = vmul.f32 %v2109, 0.5
        %v2126 = vmul.f32 %v2110, 0.5
        %v2127 = vmul.f32 %v2111, 0.5
        %v2128 = vmul.f32 %v2112, 0.5
        %v2129 = vmul.f32 %v2113, 0.5
        %v2130 = vmul.f32 %v2114, 0.5
        %v2131 = vmul.f32 %v2115, 0.5
        %v2132 = vmul.f32 %v1911, %v2116
        %v2133 = vmul.f32 %v1917, %v2117
        %v2134 = vmul.f32 %v1923, %v2118
        %v2135 = vmul.f32 %v1929, %v2119
        %v2136 = vmul.f32 %v1935, %v2120
        %v2137 = vmul.f32 %v1941, %v2121
        %v2138 = vmul.f32 %v1947, %v2122
        %v2139 = vmul.f32 %v1953, %v2123
        %v2140 = vmul.f32 %v1959, %v2124
        %v2141 = vmul.f32 %v1965, %v2125
        %v2142 = vmul.f32 %v1971, %v2126
        %v2143 = vmul.f32 %v1977, %v2127
        %v2144 = vmul.f32 %v1983, %v2128
        %v2145 = vmul.f32 %v1989, %v2129
        %v2146 = vmul.f32 %v1995, %v2130
        %v2147 = vmul.f32 %v2001, %v2131
        %v2148 = vld [vmem:[%s3] sm:$0x3]
        %v2149 = vlaneseq
        %v2150 = vshrl.u32 %v2149, 7
        %v2151 = vsub.s32 0, %v2150
        %v2152 = vrot.slane %v2148, %v2151
        %v2153 = vmul.f32 %v2132, %v2152
        %v2154 = vmul.f32 %v2133, %v2152
        %v2155 = vmul.f32 %v2134, %v2152
        %v2156 = vmul.f32 %v2135, %v2152
        %v2157 = vmul.f32 %v2136, %v2152
        %v2158 = vmul.f32 %v2137, %v2152
        %v2159 = vmul.f32 %v2138, %v2152
        %v2160 = vmul.f32 %v2139, %v2152
        %v2161 = vmul.f32 %v2140, %v2152
        %v2162 = vmul.f32 %v2141, %v2152
        %v2163 = vmul.f32 %v2142, %v2152
        %v2164 = vmul.f32 %v2143, %v2152
        %v2165 = vmul.f32 %v2144, %v2152
        %v2166 = vmul.f32 %v2145, %v2152
        %v2167 = vmul.f32 %v2146, %v2152
        %v2168 = vmul.f32 %v2147, %v2152
        %v2169 = vlaneseq
        %v2170 = vshrl.u32 %v2169, 7
        %v2171 = vsub.s32 1, %v2170
        %v2172 = vrot.slane %v2148, %v2171
        %v2173 = vadd.f32 %v2153, %v2172
        %v2174 = vadd.f32 %v2154, %v2172
        %v2175 = vadd.f32 %v2155, %v2172
        %v2176 = vadd.f32 %v2156, %v2172
        %v2177 = vadd.f32 %v2157, %v2172
        %v2178 = vadd.f32 %v2158, %v2172
        %v2179 = vadd.f32 %v2159, %v2172
        %v2180 = vadd.f32 %v2160, %v2172
        %v2181 = vadd.f32 %v2161, %v2172
        %v2182 = vadd.f32 %v2162, %v2172
        %v2183 = vadd.f32 %v2163, %v2172
        %v2184 = vadd.f32 %v2164, %v2172
        %v2185 = vadd.f32 %v2165, %v2172
        %v2186 = vadd.f32 %v2166, %v2172
        %v2187 = vadd.f32 %v2167, %v2172
        %v2188 = vadd.f32 %v2168, %v2172
        %2189 = vst.msk [vmem:[%s258] sm:$0xff] %vm261, %v2173
        %2190 = vst.msk [vmem:[%s258 + $0x8] sm:$0xff] %vm261, %v2174
        %2191 = vst.msk [vmem:[%s258 + $0x10] sm:$0xff] %vm261, %v2175
        %2192 = vst.msk [vmem:[%s258 + $0x18] sm:$0xff] %vm261, %v2176
        %2193 = vst.msk [vmem:[%s258 + $0x20] sm:$0xff] %vm261, %v2177
        %2194 = vst.msk [vmem:[%s258 + $0x28] sm:$0xff] %vm261, %v2178
        %2195 = vst.msk [vmem:[%s258 + $0x30] sm:$0xff] %vm261, %v2179
        %2196 = vst.msk [vmem:[%s258 + $0x38] sm:$0xff] %vm261, %v2180
        %2197 = vst.msk [vmem:[%s258 + $0x40] sm:$0xff] %vm261, %v2181
        %2198 = vst.msk [vmem:[%s258 + $0x48] sm:$0xff] %vm261, %v2182
        %2199 = vst.msk [vmem:[%s258 + $0x50] sm:$0xff] %vm261, %v2183
        %2200 = vst.msk [vmem:[%s258 + $0x58] sm:$0xff] %vm261, %v2184
        %2201 = vst.msk [vmem:[%s258 + $0x60] sm:$0xff] %vm261, %v2185
        %2202 = vst.msk [vmem:[%s258 + $0x68] sm:$0xff] %vm261, %v2186
        %2203 = vst.msk [vmem:[%s258 + $0x70] sm:$0xff] %vm261, %v2187
        %2204 = vst.msk [vmem:[%s258 + $0x78] sm:$0xff] %vm261, %v2188
        %s2205 = sand.u32 %s133, 1
        %s2206 = scalar_lea.sflag [#allocation5], %s2205
        %s2207 = sand.u32 %s133, 1
        %s2208 = smul.addr %s2207, 128
        %s2209 = scalar_lea.vmem [#allocation9], %s2208
        // Predicated region
        $region57: #{tpu_custom_call.1} parent=35 // pred_check
          %p2210 = pneg %p143
        $region58: #{tpu_custom_call.1} parent=35 // pred_check_branch
          %2212 = sbr.rel (%p2210) target = $region60
        $region59: #{tpu_custom_call.1} parent=35 // pred_region
          %s2213 = smul.u32 8, %s27
          %s2215 = ssub.s32 2048, 2048
          %2216 = vsyncadd %s2206, %s2215
          %s2217 = smul.addr %s2213, 2
          %s2218 = smul.addr %s26, 32
          %s2219 = sadd.s32 %s2217, %s2218
          %s2220 = smul.addr %s2219, 128
          %s2221 = scalar_lea.hbm %s4, %s2220
          %s2222 = sshll.u32 %s2209, 4
          %s2223 = int_to_ptr.vmem [resolvable:$true] %s2222
          %2228 = dma.vmem_to_hbm [thread:$0]  %s2223, 2048, %s2221, %s2206, 128, 128, 8
        $region60: #{tpu_custom_call.1} parent=35 // pred_fallthru
          _
      $region36: #{tpu_custom_call.1} parent=5 // pred_fallthru
        _
      %p2229 = scmp.le.s32.totalorder 2, %s17
      // Predicated region
      $region61: #{tpu_custom_call.1} parent=5 // pred_check
        %p2230 = pneg %p2229
      $region62: #{tpu_custom_call.1} parent=5 // pred_check_branch
        %2232 = sbr.rel (%p2230) target = $region64
      $region63: #{tpu_custom_call.1} parent=5 // pred_region
        %s2233 = ssub.s32 %s17, 2
        // Predicated region
        $region65: #{tpu_custom_call.1} parent=63 // pred_check
          %p2234 = pneg %p149
        $region66: #{tpu_custom_call.1} parent=63 // pred_check_branch
          %2236 = sbr.rel (%p2234) target = $region68
        $region67: #{tpu_custom_call.1} parent=63 // pred_region
          %s2237 = sand.u32 %s134, 1
          %s2238 = scalar_lea.sflag [#allocation5], %s2237
          %s2239 = sand.u32 %s134, 1
          %s2240 = smul.addr %s2239, 128
          %s2241 = scalar_lea.vmem [#allocation9], %s2240
          %2242 = dma.done %s2238, 2048
        $region68: #{tpu_custom_call.1} parent=63 // pred_fallthru
          _
      $region64: #{tpu_custom_call.1} parent=5 // pred_fallthru
        _
    $region6: #{tpu_custom_call.1} parent=1 // loop_footer
      %s21 = sadd.s32 1, %s17
    $region7: #{tpu_custom_call.1} parent=1 // loop_footer_branch
      %16 = sbr.rel target = $region3
    $region8: #{tpu_custom_call.1} parent=1 // loop_exit
      _
    %2243 = vsyncpa [#allocation4], 1
    %s2244 = scalar_lea.sflag [#allocation4], 1
    %2245 = vsyncpa %s2244, 1
    %2246 = vsyncpa [#allocation7], 1
    %2247 = vsyncpa [#allocation5], 1
    %s2248 = scalar_lea.sflag [#allocation5], 1
    %2249 = vsyncpa %s2248, 1

</llo_original>
